<compile_context>
chip_gen: v6e
topology: v6e:2x2x1
jax: 0.10.0
libtpu: 0.0.40
codegen_flags: <defaults>
</compile_context>

<pallas_src>
import jax
import jax.numpy as jnp
from jax.experimental import pallas as pl
from jax.experimental.pallas import tpu as pltpu


# ----------------------------- helpers ------------------------------------- #

def _round_up(x, m):
    return ((x + m - 1) // m) * m


def _pad_to(a, axis, new_size):
    pad = new_size - a.shape[axis]
    if pad == 0:
        return a
    widths = [(0, 0)] * a.ndim
    widths[axis] = (0, pad)
    return jnp.pad(a, widths)


def _tile_m(m, cap=1024):
    """Lane-dense M tile: multiple of 128, capped at 1024.

    If the resulting grid would have a single step, halve the tile (keeping it
    a multiple of 128) so the "parallel" grid axis can actually shard across
    the two TensorCores on v7x.
    """
    mpad = _round_up(m, 128)
    tm = min(cap, mpad)
    while tm > 128 and _round_up(m, tm) // tm < 2:
        tm = max(128, _round_up(tm // 2, 128))
    return tm


# ----------------------------- Pallas kernels ------------------------------ #

def conv_relu_pool_kernel(p_ref, w_ref, b_ref, o_ref):
    """Fused conv(+bias)+ReLU+2x2-maxpool as ONE transposed (lane-dense) GEMM.

    p_ref : (KdimP, 4*TM)  im2col patches; the 4 pool taps are concatenated as
                           TM-wide (128-aligned) lane slabs.             bf16
    w_ref : (CoutP, KdimP) conv weights (rows = output channels).        bf16
    b_ref : (CoutP, 1)     bias.                                         f32
    o_ref : (CoutP, TM)    pooled output tile (channels x pooled pos).   bf16
    """
    tm = o_ref.shape[1]
    # One big GEMM (weights pushed once) instead of 4 tiny per-tap dots.
    y = jnp.dot(w_ref[...], p_ref[...], preferred_element_type=jnp.float32)
    # Max over the 4 tap slabs (static, tile-aligned slices), then a single
    # bias add + ReLU: max(a+b, c+b) == max(a, c)+b and ReLU is monotone.
    m = jnp.maximum(jnp.maximum(y[:, 0 * tm:1 * tm], y[:, 1 * tm:2 * tm]),
                    jnp.maximum(y[:, 2 * tm:3 * tm], y[:, 3 * tm:4 * tm]))
    o_ref[...] = jnp.maximum(m + b_ref[...], 0.0).astype(o_ref.dtype)


def fc3_fused_kernel(x_ref, w3_ref, b3_ref, w4_ref, b4_ref, w5_ref, b5_ref,
                     o_ref):
    """relu(x@W3+b3) -> relu(.@W4+b4) -> .@W5+b5, all inside one kernel.

    All weight matrices are padded to 128-wide outputs (zero cols/rows), so
    every GEMM and the final store are lane-dense; padded logits are zero and
    sliced off outside.
    """
    h = jnp.dot(x_ref[...], w3_ref[...],
                preferred_element_type=jnp.float32) + b3_ref[...]
    h = jnp.maximum(h, 0.0).astype(jnp.bfloat16)
    h = jnp.dot(h, w4_ref[...],
                preferred_element_type=jnp.float32) + b4_ref[...]
    h = jnp.maximum(h, 0.0).astype(jnp.bfloat16)
    o_ref[...] = (jnp.dot(h, w5_ref[...],
                          preferred_element_type=jnp.float32)
                  + b5_ref[...]).astype(o_ref.dtype)


# ----------------------------- Pallas wrappers ----------------------------- #

def conv_relu_pool(x_cbhw, w_mat, b_mat, k, cout):
    """x_cbhw: (Cin, B, H, W) bf16; w_mat: (CoutP, KdimP) bf16; b_mat: (CoutP,1) f32.

    Valid conv (stride 1) + bias + ReLU + 2x2/2 max-pool, returned as
    (cout, B, Hp, Wp) in bf16.
    """
    C, B, H, W = x_cbhw.shape
    Ho, Wo = H - k + 1, W - k + 1
    Hp, Wp = Ho // 2, Wo // 2
    Kdim = C * k * k
    CoutP, KdimP = w_mat.shape
    M = B * Hp * Wp

    # im2col (XLA layout plumbing).  K order = (cin, kh, kw), matching
    # w.reshape(cout, cin*k*k).  Pre-split into the 4 pool taps.
    cols = jnp.stack([x_cbhw[:, :, i:i + Ho, j:j + Wo]
                      for i in range(k) for j in range(k)],
                     axis=1)                                # (C, k*k, B, Ho, Wo)
    cols = cols.reshape(Kdim, B, Hp, 2, Wp, 2)
    cols = jnp.transpose(cols, (3, 5, 0, 1, 2, 4))          # (dy, dx, K, B, Hp, Wp)
    taps = cols.reshape(4, Kdim, M)

    TM = _tile_m(M)
    Mpad = _round_up(M, TM)
    n_tiles = Mpad // TM
    taps = _pad_to(taps, 2, Mpad)                           # zero pad M
    taps = _pad_to(taps, 1, KdimP)                          # zero pad K (matches w cols)
    # Tap-major, 128-aligned lane slabs per M tile -> one GEMM per grid step.
    taps = taps.reshape(4, KdimP, n_tiles, TM)
    taps = jnp.transpose(taps, (1, 2, 0, 3)).reshape(KdimP, n_tiles * 4 * TM)

    out = pl.pallas_call(
        conv_relu_pool_kernel,
        out_shape=jax.ShapeDtypeStruct((CoutP, Mpad), jnp.bfloat16),
        grid=(n_tiles,),
        in_specs=[
            pl.BlockSpec((KdimP, 4 * TM), lambda i: (0, i)),
            pl.BlockSpec((CoutP, KdimP), lambda i: (0, 0)),   # weights resident
            pl.BlockSpec((CoutP, 1), lambda i: (0, 0)),       # bias resident
        ],
        out_specs=pl.BlockSpec((CoutP, TM), lambda i: (0, i)),  # lane-dense out
        compiler_params=pltpu.CompilerParams(
            dimension_semantics=("parallel",)),
    )(taps, w_mat, b_mat)
    return out[:cout, :M].reshape(cout, B, Hp, Wp)


def fc3_fused(x, w3t, b3, w4t, b4, w5t, b5, n_out):
    """Three chained linear layers (ReLU on the first two) in one pallas_call."""
    B, K = x.shape
    TM = _tile_m(B)
    Bpad = _round_up(B, TM)
    xp = _pad_to(x, 0, Bpad)
    N3, N4, N5 = w3t.shape[1], w4t.shape[1], w5t.shape[1]    # all padded to 128

    out = pl.pallas_call(
        fc3_fused_kernel,
        out_shape=jax.ShapeDtypeStruct((Bpad, N5), jnp.float32),
        grid=(Bpad // TM,),
        in_specs=[
            pl.BlockSpec((TM, K), lambda i: (i, 0)),
            pl.BlockSpec((K, N3), lambda i: (0, 0)),    # all weights resident
            pl.BlockSpec((1, N3), lambda i: (0, 0)),
            pl.BlockSpec((N3, N4), lambda i: (0, 0)),
            pl.BlockSpec((1, N4), lambda i: (0, 0)),
            pl.BlockSpec((N4, N5), lambda i: (0, 0)),
            pl.BlockSpec((1, N5), lambda i: (0, 0)),
        ],
        out_specs=pl.BlockSpec((TM, N5), lambda i: (i, 0)),   # lane-dense (128)
        compiler_params=pltpu.CompilerParams(
            dimension_semantics=("parallel",)),
    )(xp, w3t, b3, w4t, b4, w5t, b5)
    return out[:B, :n_out]


# ------------------------------ params & forward --------------------------- #

def init_params(key):
    ks = jax.random.split(key, 10)
    p = {}
    p["w1"] = jax.random.normal(ks[0], (6, 3, 5, 5), jnp.float32) * 0.1
    p["b1"] = jax.random.normal(ks[1], (6,), jnp.float32) * 0.1
    p["w2"] = jax.random.normal(ks[2], (16, 6, 5, 5), jnp.float32) * 0.1
    p["b2"] = jax.random.normal(ks[3], (16,), jnp.float32) * 0.1
    p["w3"] = jax.random.normal(ks[4], (120, 400), jnp.float32) * 0.05  # (out,in)
    p["b3"] = jax.random.normal(ks[5], (120,), jnp.float32) * 0.05
    p["w4"] = jax.random.normal(ks[6], (84, 120), jnp.float32) * 0.05
    p["b4"] = jax.random.normal(ks[7], (84,), jnp.float32) * 0.05
    p["w5"] = jax.random.normal(ks[8], (10, 84), jnp.float32) * 0.05
    p["b5"] = jax.random.normal(ks[9], (10,), jnp.float32) * 0.05
    return p


def prepare_params(p):
    """One-time (outside the jitted forward) re-layout + zero-padding.

    Conv weights -> (CoutP, KdimP) bf16 with CoutP a bf16-friendly sublane
    multiple and KdimP a multiple of 16.  FC weights pre-transposed to
    (in, out) and padded to 128-wide outputs; biases stay f32.
    Padded rows/cols are zero, so results are exact after slicing.
    """
    def conv_w(w, cout_p, kdim_p):
        wm = w.reshape(w.shape[0], -1)
        return _pad_to(_pad_to(wm, 0, cout_p), 1, kdim_p).astype(jnp.bfloat16)

    def conv_b(b, cout_p):
        return _pad_to(b.reshape(-1, 1), 0, cout_p).astype(jnp.float32)

    def fc_w(w, in_p, out_p):          # torch (out, in) -> padded (in_p, out_p)
        return _pad_to(_pad_to(w.T, 0, in_p), 1, out_p).astype(jnp.bfloat16)

    def fc_b(b, out_p):
        return _pad_to(b.reshape(1, -1), 1, out_p).astype(jnp.float32)

    return {
        "w1m": conv_w(p["w1"], 16, 80),  "b1m": conv_b(p["b1"], 16),   # (16, 80)
        "w2m": conv_w(p["w2"], 16, 160), "b2m": conv_b(p["b2"], 16),   # (16, 160)
        "w3t": fc_w(p["w3"], 400, 128), "b3r": fc_b(p["b3"], 128),
        "w4t": fc_w(p["w4"], 128, 128), "b4r": fc_b(p["b4"], 128),
        "w5t": fc_w(p["w5"], 128, 128), "b5r": fc_b(p["b5"], 128),
    }


def model_forward(prepared, x_nchw):
    B = x_nchw.shape[0]
    x = jnp.transpose(x_nchw, (1, 0, 2, 3)).astype(jnp.bfloat16)     # (3, B, 32, 32)
    h = conv_relu_pool(x, prepared["w1m"], prepared["b1m"], 5, 6)    # (6, B, 14, 14)
    h = conv_relu_pool(h, prepared["w2m"], prepared["b2m"], 5, 16)   # (16, B, 5, 5)
    # (C,B,H,W) -> (B,C,H,W) flatten == torch's x.view(-1, 16*5*5) ordering.
    # TODO(synk): fuse conv2 + FC stack into one pallas_call (keep the tiny
    # conv2 output in VMEM and do this re-layout in-kernel).
    feat = jnp.transpose(h, (1, 0, 2, 3)).reshape(B, 16 * 5 * 5)     # (B, 400) bf16
    return fc3_fused(feat, prepared["w3t"], prepared["b3r"],
                     prepared["w4t"], prepared["b4r"],
                     prepared["w5t"], prepared["b5r"], n_out=10)      # (B, 10)


# ------------------------------ reference (pure XLA) ------------------------ #

def reference_forward(params, x):
    hi = jax.lax.Precision.HIGHEST
    dn = ("NCHW", "OIHW", "NCHW")
    h = jax.lax.conv_general_dilated(x, params["w1"], (1, 1), "VALID",
                                     dimension_numbers=dn, precision=hi)
    h = jnp.maximum(h + params["b1"][None, :, None, None], 0.0)
    h = jax.lax.reduce_window(h, -jnp.inf, jax.lax.max,
                              (1, 1, 2, 2), (1, 1, 2, 2), "VALID")
    h = jax.lax.conv_general_dilated(h, params["w2"], (1, 1), "VALID",
                                     dimension_numbers=dn, precision=hi)
    h = jnp.maximum(h + params["b2"][None, :, None, None], 0.0)
    h = jax.lax.reduce_window(h, -jnp.inf, jax.lax.max,
                              (1, 1, 2, 2), (1, 1, 2, 2), "VALID")
    h = h.reshape(h.shape[0], -1)
    h = jnp.maximum(jnp.dot(h, params["w3"].T, precision=hi) + params["b3"], 0.0)
    h = jnp.maximum(jnp.dot(h, params["w4"].T, precision=hi) + params["b4"], 0.0)
    return jnp.dot(h, params["w5"].T, precision=hi) + params["b5"]


if __name__ == "__main__":
    key = jax.random.PRNGKey(0)
    k_x, k_p = jax.random.split(key)
    # CIFAR-10 geometry is required for the 16*5*5 flatten to be valid.
    x = jax.random.normal(k_x, (2, 3, 32, 32), jnp.float32)
    params = init_params(k_p)
    prepared = prepare_params(params)

    out = jax.block_until_ready(jax.jit(model_forward)(prepared, x))
    assert out.shape == (2, 10), out.shape

    ref = jax.block_until_ready(jax.jit(reference_forward)(params, x))
    err = float(jnp.max(jnp.abs(out - ref)))
    assert err < 5e-2, f"max abs err vs reference: {err}"
    print("KERNEL_OK")
</pallas_src>

<mosaic_0001>
module attributes {stable_mosaic.version = 11 : i64} {
  func.func @conv_relu_pool_kernel(%arg0: i32, %arg1: memref<80x1024xbf16, #tpu.memory_space<vmem>>, %arg2: memref<16x80xbf16, #tpu.memory_space<vmem>>, %arg3: memref<16x1xf32, #tpu.memory_space<vmem>>, %arg4: memref<16x256xbf16, #tpu.memory_space<vmem>>) attributes {dimension_semantics = [#tpu.dimension_semantics<parallel>], iteration_bounds = array<i64: 2>, scalar_prefetch = 0 : i64, scratch_operands = 0 : i64, tpu.core_type = #tpu.core_type<tc>, window_params = [{transform_indices = @transform_0, window_bounds = array<i64: 80, 1024>}, {pipeline_mode = #tpu.pipeline_mode<synchronous>, transform_indices = @transform_1, window_bounds = array<i64: 16, 80>}, {pipeline_mode = #tpu.pipeline_mode<synchronous>, transform_indices = @transform_2, window_bounds = array<i64: 16, 1>}, {transform_indices = @transform_3, window_bounds = array<i64: 16, 256>}]} {
    %c0 = arith.constant 0 : index
    %c0_0 = arith.constant 0 : index
    %0 = vector.load %arg2[%c0, %c0_0] : memref<16x80xbf16, #tpu.memory_space<vmem>>, vector<16x80xbf16>
    %c0_1 = arith.constant 0 : index
    %c0_2 = arith.constant 0 : index
    %1 = vector.load %arg1[%c0_1, %c0_2] : memref<80x1024xbf16, #tpu.memory_space<vmem>>, vector<80x1024xbf16>
    %cst = arith.constant dense<0.000000e+00> : vector<16x1024xf32>
    %2 = tpu.matmul %0, %1, %cst {dimension_numbers = #tpu.dot_dimension_numbers<[1], [0], [0], [1], [0, 0, 1, 1], [], []>} : vector<16x80xbf16>, vector<80x1024xbf16>, vector<16x1024xf32> -> vector<16x1024xf32>
    %3 = vector.extract_strided_slice %2 {offsets = [0, 0], sizes = [16, 256], strides = [1, 1]} : vector<16x1024xf32> to vector<16x256xf32>
    %4 = vector.extract_strided_slice %2 {offsets = [0, 256], sizes = [16, 256], strides = [1, 1]} : vector<16x1024xf32> to vector<16x256xf32>
    %5 = arith.maximumf %3, %4 : vector<16x256xf32>
    %6 = vector.extract_strided_slice %2 {offsets = [0, 512], sizes = [16, 256], strides = [1, 1]} : vector<16x1024xf32> to vector<16x256xf32>
    %7 = vector.extract_strided_slice %2 {offsets = [0, 768], sizes = [16, 256], strides = [1, 1]} : vector<16x1024xf32> to vector<16x256xf32>
    %8 = arith.maximumf %6, %7 : vector<16x256xf32>
    %9 = arith.maximumf %5, %8 : vector<16x256xf32>
    %c0_3 = arith.constant 0 : index
    %c0_4 = arith.constant 0 : index
    %10 = vector.load %arg3[%c0_3, %c0_4] : memref<16x1xf32, #tpu.memory_space<vmem>>, vector<16x1xf32>
    %11 = vector.broadcast %10 : vector<16x1xf32> to vector<16x256xf32>
    %12 = arith.addf %9, %11 : vector<16x256xf32>
    %cst_5 = arith.constant 0.000000e+00 : f32
    %13 = vector.broadcast %cst_5 : f32 to vector<16x256xf32>
    %14 = arith.maximumf %12, %13 : vector<16x256xf32>
    %15 = arith.truncf %14 : vector<16x256xf32> to vector<16x256xbf16>
    %c0_6 = arith.constant 0 : index
    %c0_7 = arith.constant 0 : index
    %16 = vector.load %arg4[%c0_6, %c0_7] : memref<16x256xbf16, #tpu.memory_space<vmem>>, vector<16x256xbf16>
    tpu.vector_store %arg4[%c0_6, %c0_7], %15 {strides = array<i32>} : memref<16x256xbf16, #tpu.memory_space<vmem>>, vector<16x256xbf16>,
    return
  }
  func.func @transform_0(%arg0: i32) -> (i32, i32) {
    %c0_i32 = arith.constant 0 : i32
    %c0_i32_0 = arith.constant 0 : i32
    return %c0_i32, %arg0 : i32, i32
  }
  func.func @transform_1(%arg0: i32) -> (i32, i32) {
    %c0_i32 = arith.constant 0 : i32
    %c0_i32_0 = arith.constant 0 : i32
    %c0_i32_1 = arith.constant 0 : i32
    return %c0_i32, %c0_i32_0 : i32, i32
  }
  func.func @transform_2(%arg0: i32) -> (i32, i32) {
    %c0_i32 = arith.constant 0 : i32
    %c0_i32_0 = arith.constant 0 : i32
    %c0_i32_1 = arith.constant 0 : i32
    return %c0_i32, %c0_i32_0 : i32, i32
  }
  func.func @transform_3(%arg0: i32) -> (i32, i32) {
    %c0_i32 = arith.constant 0 : i32
    %c0_i32_0 = arith.constant 0 : i32
    return %c0_i32, %arg0 : i32, i32
  }
}

module attributes {stable_mosaic.version = 11 : i64} {
  func.func @conv_relu_pool_kernel(%arg0: i32, %arg1: memref<160x512xbf16, #tpu.memory_space<vmem>>, %arg2: memref<16x160xbf16, #tpu.memory_space<vmem>>, %arg3: memref<16x1xf32, #tpu.memory_space<vmem>>, %arg4: memref<16x128xbf16, #tpu.memory_space<vmem>>) attributes {dimension_semantics = [#tpu.dimension_semantics<parallel>], iteration_bounds = array<i64: 1>, scalar_prefetch = 0 : i64, scratch_operands = 0 : i64, tpu.core_type = #tpu.core_type<tc>, window_params = [{transform_indices = @transform_0, window_bounds = array<i64: 160, 512>}, {pipeline_mode = #tpu.pipeline_mode<synchronous>, transform_indices = @transform_1, window_bounds = array<i64: 16, 160>}, {pipeline_mode = #tpu.pipeline_mode<synchronous>, transform_indices = @transform_2, window_bounds = array<i64: 16, 1>}, {transform_indices = @transform_3, window_bounds = array<i64: 16, 128>}]} {
    %c0 = arith.constant 0 : index
    %c0_0 = arith.constant 0 : index
    %0 = vector.load %arg2[%c0, %c0_0] : memref<16x160xbf16, #tpu.memory_space<vmem>>, vector<16x160xbf16>
    %c0_1 = arith.constant 0 : index
    %c0_2 = arith.constant 0 : index
    %1 = vector.load %arg1[%c0_1, %c0_2] : memref<160x512xbf16, #tpu.memory_space<vmem>>, vector<160x512xbf16>
    %cst = arith.constant dense<0.000000e+00> : vector<16x512xf32>
    %2 = tpu.matmul %0, %1, %cst {dimension_numbers = #tpu.dot_dimension_numbers<[1], [0], [0], [1], [0, 0, 1, 1], [], []>} : vector<16x160xbf16>, vector<160x512xbf16>, vector<16x512xf32> -> vector<16x512xf32>
    %3 = vector.extract_strided_slice %2 {offsets = [0, 0], sizes = [16, 128], strides = [1, 1]} : vector<16x512xf32> to vector<16x128xf32>
    %4 = vector.extract_strided_slice %2 {offsets = [0, 128], sizes = [16, 128], strides = [1, 1]} : vector<16x512xf32> to vector<16x128xf32>
    %5 = arith.maximumf %3, %4 : vector<16x128xf32>
    %6 = vector.extract_strided_slice %2 {offsets = [0, 256], sizes = [16, 128], strides = [1, 1]} : vector<16x512xf32> to vector<16x128xf32>
    %7 = vector.extract_strided_slice %2 {offsets = [0, 384], sizes = [16, 128], strides = [1, 1]} : vector<16x512xf32> to vector<16x128xf32>
    %8 = arith.maximumf %6, %7 : vector<16x128xf32>
    %9 = arith.maximumf %5, %8 : vector<16x128xf32>
    %c0_3 = arith.constant 0 : index
    %c0_4 = arith.constant 0 : index
    %10 = vector.load %arg3[%c0_3, %c0_4] : memref<16x1xf32, #tpu.memory_space<vmem>>, vector<16x1xf32>
    %11 = vector.broadcast %10 : vector<16x1xf32> to vector<16x128xf32>
    %12 = arith.addf %9, %11 : vector<16x128xf32>
    %cst_5 = arith.constant 0.000000e+00 : f32
    %13 = vector.broadcast %cst_5 : f32 to vector<16x128xf32>
    %14 = arith.maximumf %12, %13 : vector<16x128xf32>
    %15 = arith.truncf %14 : vector<16x128xf32> to vector<16x128xbf16>
    %c0_6 = arith.constant 0 : index
    %c0_7 = arith.constant 0 : index
    %16 = vector.load %arg4[%c0_6, %c0_7] : memref<16x128xbf16, #tpu.memory_space<vmem>>, vector<16x128xbf16>
    tpu.vector_store %arg4[%c0_6, %c0_7], %15 {strides = array<i32>} : memref<16x128xbf16, #tpu.memory_space<vmem>>, vector<16x128xbf16>,
    return
  }
  func.func @transform_0(%arg0: i32) -> (i32, i32) {
    %c0_i32 = arith.constant 0 : i32
    %c0_i32_0 = arith.constant 0 : i32
    return %c0_i32, %arg0 : i32, i32
  }
  func.func @transform_1(%arg0: i32) -> (i32, i32) {
    %c0_i32 = arith.constant 0 : i32
    %c0_i32_0 = arith.constant 0 : i32
    %c0_i32_1 = arith.constant 0 : i32
    return %c0_i32, %c0_i32_0 : i32, i32
  }
  func.func @transform_2(%arg0: i32) -> (i32, i32) {
    %c0_i32 = arith.constant 0 : i32
    %c0_i32_0 = arith.constant 0 : i32
    %c0_i32_1 = arith.constant 0 : i32
    return %c0_i32, %c0_i32_0 : i32, i32
  }
  func.func @transform_3(%arg0: i32) -> (i32, i32) {
    %c0_i32 = arith.constant 0 : i32
    %c0_i32_0 = arith.constant 0 : i32
    return %c0_i32, %arg0 : i32, i32
  }
}

module attributes {stable_mosaic.version = 11 : i64} {
  func.func @fc3_fused_kernel(%arg0: i32, %arg1: memref<128x400xbf16, #tpu.memory_space<vmem>>, %arg2: memref<400x128xbf16, #tpu.memory_space<vmem>>, %arg3: memref<1x128xf32, #tpu.memory_space<vmem>>, %arg4: memref<128x128xbf16, #tpu.memory_space<vmem>>, %arg5: memref<1x128xf32, #tpu.memory_space<vmem>>, %arg6: memref<128x128xbf16, #tpu.memory_space<vmem>>, %arg7: memref<1x128xf32, #tpu.memory_space<vmem>>, %arg8: memref<128x128xf32, #tpu.memory_space<vmem>>) attributes {dimension_semantics = [#tpu.dimension_semantics<parallel>], iteration_bounds = array<i64: 1>, scalar_prefetch = 0 : i64, scratch_operands = 0 : i64, tpu.core_type = #tpu.core_type<tc>, window_params = [{transform_indices = @transform_0, window_bounds = array<i64: 128, 400>}, {pipeline_mode = #tpu.pipeline_mode<synchronous>, transform_indices = @transform_1, window_bounds = array<i64: 400, 128>}, {pipeline_mode = #tpu.pipeline_mode<synchronous>, transform_indices = @transform_2, window_bounds = array<i64: 1, 128>}, {pipeline_mode = #tpu.pipeline_mode<synchronous>, transform_indices = @transform_3, window_bounds = array<i64: 128, 128>}, {pipeline_mode = #tpu.pipeline_mode<synchronous>, transform_indices = @transform_4, window_bounds = array<i64: 1, 128>}, {pipeline_mode = #tpu.pipeline_mode<synchronous>, transform_indices = @transform_5, window_bounds = array<i64: 128, 128>}, {pipeline_mode = #tpu.pipeline_mode<synchronous>, transform_indices = @transform_6, window_bounds = array<i64: 1, 128>}, {transform_indices = @transform_7, window_bounds = array<i64: 128, 128>}]} {
    %c0 = arith.constant 0 : index
    %c0_0 = arith.constant 0 : index
    %0 = vector.load %arg1[%c0, %c0_0] : memref<128x400xbf16, #tpu.memory_space<vmem>>, vector<128x400xbf16>
    %c0_1 = arith.constant 0 : index
    %c0_2 = arith.constant 0 : index
    %1 = vector.load %arg2[%c0_1, %c0_2] : memref<400x128xbf16, #tpu.memory_space<vmem>>, vector<400x128xbf16>
    %cst = arith.constant dense<0.000000e+00> : vector<128x128xf32>
    %2 = tpu.matmul %0, %1, %cst {dimension_numbers = #tpu.dot_dimension_numbers<[1], [0], [0], [1], [0, 0, 1, 1], [], []>} : vector<128x400xbf16>, vector<400x128xbf16>, vector<128x128xf32> -> vector<128x128xf32>
    %c0_3 = arith.constant 0 : index
    %c0_4 = arith.constant 0 : index
    %3 = vector.load %arg3[%c0_3, %c0_4] : memref<1x128xf32, #tpu.memory_space<vmem>>, vector<1x128xf32>
    %4 = vector.broadcast %3 : vector<1x128xf32> to vector<128x128xf32>
    %5 = arith.addf %2, %4 : vector<128x128xf32>
    %cst_5 = arith.constant 0.000000e+00 : f32
    %6 = vector.broadcast %cst_5 : f32 to vector<128x128xf32>
    %7 = arith.maximumf %5, %6 : vector<128x128xf32>
    %8 = arith.truncf %7 : vector<128x128xf32> to vector<128x128xbf16>
    %c0_6 = arith.constant 0 : index
    %c0_7 = arith.constant 0 : index
    %9 = vector.load %arg4[%c0_6, %c0_7] : memref<128x128xbf16, #tpu.memory_space<vmem>>, vector<128x128xbf16>
    %cst_8 = arith.constant dense<0.000000e+00> : vector<128x128xf32>
    %10 = tpu.matmul %8, %9, %cst_8 {dimension_numbers = #tpu.dot_dimension_numbers<[1], [0], [0], [1], [0, 0, 1, 1], [], []>} : vector<128x128xbf16>, vector<128x128xbf16>, vector<128x128xf32> -> vector<128x128xf32>
    %c0_9 = arith.constant 0 : index
    %c0_10 = arith.constant 0 : index
    %11 = vector.load %arg5[%c0_9, %c0_10] : memref<1x128xf32, #tpu.memory_space<vmem>>, vector<1x128xf32>
    %12 = vector.broadcast %11 : vector<1x128xf32> to vector<128x128xf32>
    %13 = arith.addf %10, %12 : vector<128x128xf32>
    %cst_11 = arith.constant 0.000000e+00 : f32
    %14 = vector.broadcast %cst_11 : f32 to vector<128x128xf32>
    %15 = arith.maximumf %13, %14 : vector<128x128xf32>
    %16 = arith.truncf %15 : vector<128x128xf32> to vector<128x128xbf16>
    %c0_12 = arith.constant 0 : index
    %c0_13 = arith.constant 0 : index
    %17 = vector.load %arg6[%c0_12, %c0_13] : memref<128x128xbf16, #tpu.memory_space<vmem>>, vector<128x128xbf16>
    %cst_14 = arith.constant dense<0.000000e+00> : vector<128x128xf32>
    %18 = tpu.matmul %16, %17, %cst_14 {dimension_numbers = #tpu.dot_dimension_numbers<[1], [0], [0], [1], [0, 0, 1, 1], [], []>} : vector<128x128xbf16>, vector<128x128xbf16>, vector<128x128xf32> -> vector<128x128xf32>
    %c0_15 = arith.constant 0 : index
    %c0_16 = arith.constant 0 : index
    %19 = vector.load %arg7[%c0_15, %c0_16] : memref<1x128xf32, #tpu.memory_space<vmem>>, vector<1x128xf32>
    %20 = vector.broadcast %19 : vector<1x128xf32> to vector<128x128xf32>
    %21 = arith.addf %18, %20 : vector<128x128xf32>
    %c0_17 = arith.constant 0 : index
    %c0_18 = arith.constant 0 : index
    %22 = vector.load %arg8[%c0_17, %c0_18] : memref<128x128xf32, #tpu.memory_space<vmem>>, vector<128x128xf32>
    tpu.vector_store %arg8[%c0_17, %c0_18], %21 {strides = array<i32>} : memref<128x128xf32, #tpu.memory_space<vmem>>, vector<128x128xf32>,
    return
  }
  func.func @transform_0(%arg0: i32) -> (i32, i32) {
    %c0_i32 = arith.constant 0 : i32
    %c0_i32_0 = arith.constant 0 : i32
    return %arg0, %c0_i32 : i32, i32
  }
  func.func @transform_1(%arg0: i32) -> (i32, i32) {
    %c0_i32 = arith.constant 0 : i32
    %c0_i32_0 = arith.constant 0 : i32
    %c0_i32_1 = arith.constant 0 : i32
    return %c0_i32, %c0_i32_0 : i32, i32
  }
  func.func @transform_2(%arg0: i32) -> (i32, i32) {
    %c0_i32 = arith.constant 0 : i32
    %c0_i32_0 = arith.constant 0 : i32
    %c0_i32_1 = arith.constant 0 : i32
    return %c0_i32, %c0_i32_0 : i32, i32
  }
  func.func @transform_3(%arg0: i32) -> (i32, i32) {
    %c0_i32 = arith.constant 0 : i32
    %c0_i32_0 = arith.constant 0 : i32
    %c0_i32_1 = arith.constant 0 : i32
    return %c0_i32, %c0_i32_0 : i32, i32
  }
  func.func @transform_4(%arg0: i32) -> (i32, i32) {
    %c0_i32 = arith.constant 0 : i32
    %c0_i32_0 = arith.constant 0 : i32
    %c0_i32_1 = arith.constant 0 : i32
    return %c0_i32, %c0_i32_0 : i32, i32
  }
  func.func @transform_5(%arg0: i32) -> (i32, i32) {
    %c0_i32 = arith.constant 0 : i32
    %c0_i32_0 = arith.constant 0 : i32
    %c0_i32_1 = arith.constant 0 : i32
    return %c0_i32, %c0_i32_0 : i32, i32
  }
  func.func @transform_6(%arg0: i32) -> (i32, i32) {
    %c0_i32 = arith.constant 0 : i32
    %c0_i32_0 = arith.constant 0 : i32
    %c0_i32_1 = arith.constant 0 : i32
    return %c0_i32, %c0_i32_0 : i32, i32
  }
  func.func @transform_7(%arg0: i32) -> (i32, i32) {
    %c0_i32 = arith.constant 0 : i32
    %c0_i32_0 = arith.constant 0 : i32
    return %arg0, %c0_i32 : i32, i32
  }
}

</mosaic_0001>

<llo_original>
// kernel: model_forward.3
$region0: #{model_forward.3}
  #allocation0 [shape = 'u32[]', space=smem, size = 0x4, offset = 0x4, fixed_abs, tag = 'smem constant byte address 0x4 - core index']
  #allocation1 [shape = 'u32[144,128]{1,0:T(1,128)}', space=vmem, size = 0x12000, scoped, tag = 'internal scratch']
  %s0 = inlined_call_operand.vmem [shape: bf16[80,2048], index: 0, kind: input, shape index: {}]
  %s1 = inlined_call_operand.vmem [shape: bf16[16,80], index: 1, kind: input, shape index: {}]
  %s2 = inlined_call_operand.vmem [shape: f32[16,1], index: 2, kind: input, shape index: {}]
  %s3 = inlined_call_operand.vmem [shape: bf16[16,512], index: 3, kind: output, shape index: {}]
  %s4 = sld [smem:[#allocation0]]
  $region102: #{model_forward.3} parent=0
    _
  %s6 = ssub.s32 1, %s4
  %s7 = scalar_select 0, %s6, %s4
  $region1: #{model_forward.3} parent=0
    #allocation2 [shape = 'u8[327680]{0}', space=vmem, size = 0x50000, scoped, tag = 'input window, operand 0']
    #allocation3 [shape = 'u8[16384]{0}', space=vmem, size = 0x4000, scoped, tag = 'output window, operand 0']
    loop: start=0, step=1, limit=4
    $region2: #{model_forward.3} parent=1 // loop_pre_header
      _
    $region3: #{model_forward.3} parent=1 // loop_header
      %s9 = sphi 0, %s13
      %p10 = scmp.ge.s32.totalorder %s9, 4
      %s19 = sphi 0, %s21
      %s22 = sphi 0, %s19
      %s23 = sphi 0, %s22
      %s39 = sphi 0, %s23
      %s43 = sphi 0, %s43
      %s45 = sphi 0, %s43
      %s46 = sphi 0, %s45
      %s60 = sphi 0, %s46
      %s64 = sphi 0, %s64
      %s66 = sphi 0, %s64
      %s67 = sphi 0, %s66
      %s81 = sphi 0, %s67
      %s87 = sphi 0, %s89
      %s90 = sphi 0, %s87
      %s91 = sphi 0, %s90
      %s107 = sphi 0, %s91
    $region4: #{model_forward.3} parent=1 // loop_header_branch
      %12 = sbr.rel (%p10) target = $region8
    $region5: #{model_forward.3} parent=1 // loop_body
      %s14 = ssub.s32 %s9, 1
      %s15 = ssub.s32 %s9, 2
      %s16 = sadd.s32 %s9, 1
      %s17 = ssub.s32 %s9, %s16
      %p18 = scmp.eq.s32.totalorder %s17, 0
      %s20 = sadd.s32 %s19, 1
      %s21 = scalar_select %p18, %s19, %s20
      %p24 = pneg %p18
      %p25 = scmp.eq.s32.totalorder %s9, 1
      %p26 = por %p24, %p25
      %p27 = scmp.ne.s32.totalorder %s19, %s22
      %p28 = scmp.eq.s32.totalorder %s9, 0
      %p29 = por %p27, %p28
      %p30 = scmp.ne.s32.totalorder %s19, %s22
      %p31 = scmp.eq.s32.totalorder %s14, 1
      %p32 = por %p30, %p31
      %p33 = scmp.ne.s32.totalorder %s22, %s23
      %p34 = scmp.eq.s32.totalorder %s14, 0
      %p35 = por %p33, %p34
      %p36 = scmp.ne.s32.totalorder %s22, %s23
      %p37 = scmp.eq.s32.totalorder %s15, 1
      %p38 = por %p36, %p37
      %p40 = scmp.ne.s32.totalorder %s23, %s39
      %p41 = scmp.eq.s32.totalorder %s15, 0
      %p42 = por %p40, %p41
      %s44 = sadd.s32 %s43, 1
      %p47 = scmp.eq.s32.totalorder %s9, 1
      %p48 = scmp.ne.s32.totalorder %s43, %s45
      %p49 = scmp.eq.s32.totalorder %s9, 0
      %p50 = por %p48, %p49
      %p51 = scmp.ne.s32.totalorder %s43, %s45
      %p52 = scmp.eq.s32.totalorder %s14, 1
      %p53 = por %p51, %p52
      %p54 = scmp.ne.s32.totalorder %s45, %s46
      %p55 = scmp.eq.s32.totalorder %s14, 0
      %p56 = por %p54, %p55
      %p57 = scmp.ne.s32.totalorder %s45, %s46
      %p58 = scmp.eq.s32.totalorder %s15, 1
      %p59 = por %p57, %p58
      %p61 = scmp.ne.s32.totalorder %s46, %s60
      %p62 = scmp.eq.s32.totalorder %s15, 0
      %p63 = por %p61, %p62
      %s65 = sadd.s32 %s64, 1
      %p68 = scmp.eq.s32.totalorder %s9, 1
      %p69 = scmp.ne.s32.totalorder %s64, %s66
      %p70 = scmp.eq.s32.totalorder %s9, 0
      %p71 = por %p69, %p70
      %p72 = scmp.ne.s32.totalorder %s64, %s66
      %p73 = scmp.eq.s32.totalorder %s14, 1
      %p74 = por %p72, %p73
      %p75 = scmp.ne.s32.totalorder %s66, %s67
      %p76 = scmp.eq.s32.totalorder %s14, 0
      %p77 = por %p75, %p76
      %p78 = scmp.ne.s32.totalorder %s66, %s67
      %p79 = scmp.eq.s32.totalorder %s15, 1
      %p80 = por %p78, %p79
      %p82 = scmp.ne.s32.totalorder %s67, %s81
      %p83 = scmp.eq.s32.totalorder %s15, 0
      %p84 = por %p82, %p83
      %s85 = ssub.s32 %s9, %s16
      %p86 = scmp.eq.s32.totalorder %s85, 0
      %s88 = sadd.s32 %s87, 1
      %s89 = scalar_select %p86, %s87, %s88
      %p92 = pneg %p86
      %p93 = scmp.eq.s32.totalorder %s9, 1
      %p94 = por %p92, %p93
      %p95 = scmp.ne.s32.totalorder %s87, %s90
      %p96 = scmp.eq.s32.totalorder %s9, 0
      %p97 = por %p95, %p96
      %p98 = scmp.ne.s32.totalorder %s87, %s90
      %p99 = scmp.eq.s32.totalorder %s14, 1
      %p100 = por %p98, %p99
      %p101 = scmp.ne.s32.totalorder %s90, %s91
      %p102 = scmp.eq.s32.totalorder %s14, 0
      %p103 = por %p101, %p102
      %p104 = scmp.ne.s32.totalorder %s90, %s91
      %p105 = scmp.eq.s32.totalorder %s15, 1
      %p106 = por %p104, %p105
      %p108 = scmp.ne.s32.totalorder %s91, %s107
      %p109 = scmp.eq.s32.totalorder %s15, 0
      %p110 = por %p108, %p109
      %p111 = scmp.le.s32.totalorder 1, %s9
      %p112 = scmp.lt.s32.totalorder %s9, 3
      %p113 = pnand %p111, %p112
      %p114 = pneg %p113
      // Predicated region
      $region9: #{model_forward.3} parent=5 // pred_check
        _
      $region10: #{model_forward.3} parent=5 // pred_check_branch
        %116 = sbr.rel (%p113) target = $region12
      $region11: #{model_forward.3} parent=5 // pred_region
        %s117 = ssub.s32 %s9, 1
        // Predicated region
        $region13: #{model_forward.3} parent=11 // pred_check
          %p118 = pneg %p56
        $region14: #{model_forward.3} parent=11 // pred_check_branch
          %120 = sbr.rel (%p118) target = $region16
        $region15: #{model_forward.3} parent=11 // pred_region
          _
        $region16: #{model_forward.3} parent=11 // pred_fallthru
          _
        // Predicated region
        $region17: #{model_forward.3} parent=11 // pred_check
          %p121 = pneg %p77
        $region18: #{model_forward.3} parent=11 // pred_check_branch
          %123 = sbr.rel (%p121) target = $region20
        $region19: #{model_forward.3} parent=11 // pred_region
          _
        $region20: #{model_forward.3} parent=11 // pred_fallthru
          _
      $region12: #{model_forward.3} parent=5 // pred_fallthru
        _
      %p124 = scmp.lt.s32.totalorder %s9, 2
      // Predicated region
      $region21: #{model_forward.3} parent=5 // pred_check
        %p125 = pneg %p124
      $region22: #{model_forward.3} parent=5 // pred_check_branch
        %127 = sbr.rel (%p125) target = $region24
      $region23: #{model_forward.3} parent=5 // pred_region
        // Predicated region
        $region25: #{model_forward.3} parent=23 // pred_check
          %p128 = pneg %p29
        $region26: #{model_forward.3} parent=23 // pred_check_branch
          %130 = sbr.rel (%p128) target = $region28
        $region27: #{model_forward.3} parent=23 // pred_region
          %s131 = sand.u32 %s19, 1
          %s132 = sand.u32 %s19, 1
          %s133 = smul.addr %s132, 320
          %s134 = scalar_lea.vmem [#allocation2], %s133
          %s135 = smul.u32 8, %s9
          %s136 = smul.addr %s135, 4
          %s137 = scalar_lea.vmem %s0, %s136
          // Predicated region
          $region29: #{model_forward.3} parent=27 // pred_check
            _
          $region30: #{model_forward.3} parent=27 // pred_check_branch
            %139 = sbr.rel (0) target = $region32
          $region31: #{model_forward.3} parent=27 // pred_region
            // Predicated region
            $region33: #{model_forward.3} parent=31 // pred_check
              _
            $region34: #{model_forward.3} parent=31 // pred_check_branch
              %141 = sbr.rel (0) target = $region36
            $region35: #{model_forward.3} parent=31 // pred_region
              loop: start=0, step=1, limit=1
              $region37: #{model_forward.3} parent=35 // loop_pre_header
                _
              $region38: #{model_forward.3} parent=35 // loop_header
                %s143 = sphi 0, %s147
                %p144 = scmp.ge.s32.totalorder %s143, 1
                %s148 = sphi %s137, %s137
                %s149 = sphi %s134, %s134
              $region39: #{model_forward.3} parent=35 // loop_header_branch
                %146 = sbr.rel (%p144) target = $region43
              $region40: #{model_forward.3} parent=35 // loop_body
                %v150 = vld [vmem:[%s148] sm:$0xff]
                %151 = vst [vmem:[%s149] sm:$0xff] %v150
                %v152 = vld [vmem:[%s148 + $0x8] sm:$0xff]
                %153 = vst [vmem:[%s149 + $0x8] sm:$0xff] %v152
                %v154 = vld [vmem:[%s148 + $0x10] sm:$0xff]
                %155 = vst [vmem:[%s149 + $0x10] sm:$0xff] %v154
                %v156 = vld [vmem:[%s148 + $0x18] sm:$0xff]
                %157 = vst [vmem:[%s149 + $0x18] sm:$0xff] %v156
                %v158 = vld [vmem:[%s148 + $0x40] sm:$0xff]
                %159 = vst [vmem:[%s149 + $0x20] sm:$0xff] %v158
                %v160 = vld [vmem:[%s148 + $0x48] sm:$0xff]
                %161 = vst [vmem:[%s149 + $0x28] sm:$0xff] %v160
                %v162 = vld [vmem:[%s148 + $0x50] sm:$0xff]
                %163 = vst [vmem:[%s149 + $0x30] sm:$0xff] %v162
                %v164 = vld [vmem:[%s148 + $0x58] sm:$0xff]
                %165 = vst [vmem:[%s149 + $0x38] sm:$0xff] %v164
                %v166 = vld [vmem:[%s148 + $0x80] sm:$0xff]
                %167 = vst [vmem:[%s149 + $0x40] sm:$0xff] %v166
                %v168 = vld [vmem:[%s148 + $0x88] sm:$0xff]
                %169 = vst [vmem:[%s149 + $0x48] sm:$0xff] %v168
                %v170 = vld [vmem:[%s148 + $0x90] sm:$0xff]
                %171 = vst [vmem:[%s149 + $0x50] sm:$0xff] %v170
                %v172 = vld [vmem:[%s148 + $0x98] sm:$0xff]
                %173 = vst [vmem:[%s149 + $0x58] sm:$0xff] %v172
                %v174 = vld [vmem:[%s148 + $0xc0] sm:$0xff]
                %175 = vst [vmem:[%s149 + $0x60] sm:$0xff] %v174
                %v176 = vld [vmem:[%s148 + $0xc8] sm:$0xff]
                %177 = vst [vmem:[%s149 + $0x68] sm:$0xff] %v176
                %v178 = vld [vmem:[%s148 + $0xd0] sm:$0xff]
                %179 = vst [vmem:[%s149 + $0x70] sm:$0xff] %v178
                %v180 = vld [vmem:[%s148 + $0xd8] sm:$0xff]
                %181 = vst [vmem:[%s149 + $0x78] sm:$0xff] %v180
                %v182 = vld [vmem:[%s148 + $0x100] sm:$0xff]
                %183 = vst [vmem:[%s149 + $0x80] sm:$0xff] %v182
                %v184 = vld [vmem:[%s148 + $0x108] sm:$0xff]
                %185 = vst [vmem:[%s149 + $0x88] sm:$0xff] %v184
                %v186 = vld [vmem:[%s148 + $0x110] sm:$0xff]
                %187 = vst [vmem:[%s149 + $0x90] sm:$0xff] %v186
                %v188 = vld [vmem:[%s148 + $0x118] sm:$0xff]
                %189 = vst [vmem:[%s149 + $0x98] sm:$0xff] %v188
                %v190 = vld [vmem:[%s148 + $0x140] sm:$0xff]
                %191 = vst [vmem:[%s149 + $0xa0] sm:$0xff] %v190
                %v192 = vld [vmem:[%s148 + $0x148] sm:$0xff]
                %193 = vst [vmem:[%s149 + $0xa8] sm:$0xff] %v192
                %v194 = vld [vmem:[%s148 + $0x150] sm:$0xff]
                %195 = vst [vmem:[%s149 + $0xb0] sm:$0xff] %v194
                %v196 = vld [vmem:[%s148 + $0x158] sm:$0xff]
                %197 = vst [vmem:[%s149 + $0xb8] sm:$0xff] %v196
                %v198 = vld [vmem:[%s148 + $0x180] sm:$0xff]
                %199 = vst [vmem:[%s149 + $0xc0] sm:$0xff] %v198
                %v200 = vld [vmem:[%s148 + $0x188] sm:$0xff]
                %201 = vst [vmem:[%s149 + $0xc8] sm:$0xff] %v200
                %v202 = vld [vmem:[%s148 + $0x190] sm:$0xff]
                %203 = vst [vmem:[%s149 + $0xd0] sm:$0xff] %v202
                %v204 = vld [vmem:[%s148 + $0x198] sm:$0xff]
                %205 = vst [vmem:[%s149 + $0xd8] sm:$0xff] %v204
                %v206 = vld [vmem:[%s148 + $0x1c0] sm:$0xff]
                %207 = vst [vmem:[%s149 + $0xe0] sm:$0xff] %v206
                %v208 = vld [vmem:[%s148 + $0x1c8] sm:$0xff]
                %209 = vst [vmem:[%s149 + $0xe8] sm:$0xff] %v208
                %v210 = vld [vmem:[%s148 + $0x1d0] sm:$0xff]
                %211 = vst [vmem:[%s149 + $0xf0] sm:$0xff] %v210
                %v212 = vld [vmem:[%s148 + $0x1d8] sm:$0xff]
                %213 = vst [vmem:[%s149 + $0xf8] sm:$0xff] %v212
                %v214 = vld [vmem:[%s148 + $0x200] sm:$0xff]
                %215 = vst [vmem:[%s149 + $0x100] sm:$0xff] %v214
                %v216 = vld [vmem:[%s148 + $0x208] sm:$0xff]
                %217 = vst [vmem:[%s149 + $0x108] sm:$0xff] %v216
                %v218 = vld [vmem:[%s148 + $0x210] sm:$0xff]
                %219 = vst [vmem:[%s149 + $0x110] sm:$0xff] %v218
                %v220 = vld [vmem:[%s148 + $0x218] sm:$0xff]
                %221 = vst [vmem:[%s149 + $0x118] sm:$0xff] %v220
                %v222 = vld [vmem:[%s148 + $0x240] sm:$0xff]
                %223 = vst [vmem:[%s149 + $0x120] sm:$0xff] %v222
                %v224 = vld [vmem:[%s148 + $0x248] sm:$0xff]
                %225 = vst [vmem:[%s149 + $0x128] sm:$0xff] %v224
                %v226 = vld [vmem:[%s148 + $0x250] sm:$0xff]
                %227 = vst [vmem:[%s149 + $0x130] sm:$0xff] %v226
                %v228 = vld [vmem:[%s148 + $0x258] sm:$0xff]
                %229 = vst [vmem:[%s149 + $0x138] sm:$0xff] %v228
              $region41: #{model_forward.3} parent=35 // loop_footer
                %s147 = sadd.s32 1, %s143
              $region42: #{model_forward.3} parent=35 // loop_footer_branch
                %142 = sbr.rel target = $region38
              $region43: #{model_forward.3} parent=35 // loop_exit
                _
            $region36: #{model_forward.3} parent=31 // pred_fallthru
              _
            // Predicated region
            $region44: #{model_forward.3} parent=31 // pred_check
              _
            $region45: #{model_forward.3} parent=31 // pred_check_branch
              %231 = sbr.rel target = $region47
            $region46: #{model_forward.3} parent=31 // pred_region
              _
            $region47: #{model_forward.3} parent=31 // pred_fallthru
              _
          $region32: #{model_forward.3} parent=27 // pred_fallthru
            _
          %232 = vnop
        $region28: #{model_forward.3} parent=23 // pred_fallthru
          _
      $region24: #{model_forward.3} parent=5 // pred_fallthru
        _
      %p233 = scmp.le.s32.totalorder 1, %s9
      %p234 = scmp.lt.s32.totalorder %s9, 3
      %p235 = pnand %p233, %p234
      %p236 = pneg %p235
      // Predicated region
      $region48: #{model_forward.3} parent=5 // pred_check
        _
      $region49: #{model_forward.3} parent=5 // pred_check_branch
        %238 = sbr.rel (%p235) target = $region51
      $region50: #{model_forward.3} parent=5 // pred_region
        %s239 = ssub.s32 %s9, 1
        %s240 = sand.u32 %s22, 1
        %s241 = sand.u32 %s22, 1
        %s242 = smul.addr %s241, 320
        %s243 = scalar_lea.vmem [#allocation2], %s242
        // Predicated region
        $region52: #{model_forward.3} parent=50 // pred_check
          %p244 = pneg %p35
        $region53: #{model_forward.3} parent=50 // pred_check_branch
          %246 = sbr.rel (%p244) target = $region55
        $region54: #{model_forward.3} parent=50 // pred_region
          _
        $region55: #{model_forward.3} parent=50 // pred_fallthru
          _
        %s247 = sand.u32 %s22, 1
        %s248 = sand.u32 %s22, 1
        %s249 = smul.addr %s248, 320
        %s250 = scalar_lea.vmem [#allocation2], %s249
        %p251 = pneg %p35
        %p252 = pneg %p32
        %p253 = pneg %p56
        %p254 = pneg %p53
        %p255 = pneg %p77
        %p256 = pneg %p74
        %p257 = pneg %p103
        %p258 = pneg %p100
        %s259 = sand.u32 %s90, 1
        %s260 = sand.u32 %s90, 1
        %s261 = smul.addr %s260, 16
        %s262 = scalar_lea.vmem [#allocation3], %s261
        %s263 = smul.u32 8, %s14
        %s264 = smul.u32 2, %s14
        %v266 = vld [vmem:[%s1] sm:$0xf]
        %v267 = vld [vmem:[%s1 + $0x4] sm:$0xf]
        %v268 = vld [vmem:[%s243] sm:$0xff]
        %v269 = vld [vmem:[%s243 + $0x8] sm:$0xff]
        %v270 = vld [vmem:[%s243 + $0x10] sm:$0xff]
        %v271 = vld [vmem:[%s243 + $0x18] sm:$0xff]
        %v272 = vld [vmem:[%s243 + $0x20] sm:$0xff]
        %v273 = vld [vmem:[%s243 + $0x28] sm:$0xff]
        %v274 = vld [vmem:[%s243 + $0x30] sm:$0xff]
        %v275 = vld [vmem:[%s243 + $0x38] sm:$0xff]
        %v276 = vld [vmem:[%s243 + $0x40] sm:$0xff]
        %v277 = vld [vmem:[%s243 + $0x48] sm:$0xff]
        %v278 = vld [vmem:[%s243 + $0x50] sm:$0xff]
        %v279 = vld [vmem:[%s243 + $0x58] sm:$0xff]
        %v280 = vld [vmem:[%s243 + $0x60] sm:$0xff]
        %v281 = vld [vmem:[%s243 + $0x68] sm:$0xff]
        %v282 = vld [vmem:[%s243 + $0x70] sm:$0xff]
        %v283 = vld [vmem:[%s243 + $0x78] sm:$0xff]
        %v284 = vld [vmem:[%s243 + $0x80] sm:$0xff]
        %v285 = vld [vmem:[%s243 + $0x88] sm:$0xff]
        %v286 = vld [vmem:[%s243 + $0x90] sm:$0xff]
        %v287 = vld [vmem:[%s243 + $0x98] sm:$0xff]
        %v288 = vld [vmem:[%s243 + $0xa0] sm:$0xff]
        %v289 = vld [vmem:[%s243 + $0xa8] sm:$0xff]
        %v290 = vld [vmem:[%s243 + $0xb0] sm:$0xff]
        %v291 = vld [vmem:[%s243 + $0xb8] sm:$0xff]
        %v292 = vld [vmem:[%s243 + $0xc0] sm:$0xff]
        %v293 = vld [vmem:[%s243 + $0xc8] sm:$0xff]
        %v294 = vld [vmem:[%s243 + $0xd0] sm:$0xff]
        %v295 = vld [vmem:[%s243 + $0xd8] sm:$0xff]
        %v296 = vld [vmem:[%s243 + $0xe0] sm:$0xff]
        %v297 = vld [vmem:[%s243 + $0xe8] sm:$0xff]
        %v298 = vld [vmem:[%s243 + $0xf0] sm:$0xff]
        %v299 = vld [vmem:[%s243 + $0xf8] sm:$0xff]
        %v300 = vld [vmem:[%s243 + $0x100] sm:$0xff]
        %v301 = vld [vmem:[%s243 + $0x108] sm:$0xff]
        %v302 = vld [vmem:[%s243 + $0x110] sm:$0xff]
        %v303 = vld [vmem:[%s243 + $0x118] sm:$0xff]
        %v304 = vld [vmem:[%s243 + $0x120] sm:$0xff]
        %v305 = vld [vmem:[%s243 + $0x128] sm:$0xff]
        %v306 = vld [vmem:[%s243 + $0x130] sm:$0xff]
        %v307 = vld [vmem:[%s243 + $0x138] sm:$0xff]
        %v310 = vunpack.c.l.b16 %v266
        %v311 = vunpack.c.l.b16 %v267
        %v312 = vpack.c.b16 %v311, %v310
        %v353 = vunpack.c.l.b16 %v268
        %v354 = vunpack.c.h.b16 %v268
        %v355 = vunpack.c.l.b16 %v269
        %v356 = vunpack.c.h.b16 %v269
        %v357 = vunpack.c.l.b16 %v270
        %v358 = vunpack.c.h.b16 %v270
        %v359 = vunpack.c.l.b16 %v271
        %v360 = vunpack.c.h.b16 %v271
        %v361 = vunpack.c.l.b16 %v272
        %v362 = vunpack.c.h.b16 %v272
        %v363 = vunpack.c.l.b16 %v273
        %v364 = vunpack.c.h.b16 %v273
        %v365 = vunpack.c.l.b16 %v274
        %v366 = vunpack.c.h.b16 %v274
        %v367 = vunpack.c.l.b16 %v275
        %v368 = vunpack.c.h.b16 %v275
        %v369 = vunpack.c.l.b16 %v276
        %v370 = vunpack.c.h.b16 %v276
        %v371 = vunpack.c.l.b16 %v277
        %v372 = vunpack.c.h.b16 %v277
        %v373 = vunpack.c.l.b16 %v278
        %v374 = vunpack.c.h.b16 %v278
        %v375 = vunpack.c.l.b16 %v279
        %v376 = vunpack.c.h.b16 %v279
        %v377 = vunpack.c.l.b16 %v280
        %v378 = vunpack.c.h.b16 %v280
        %v379 = vunpack.c.l.b16 %v281
        %v380 = vunpack.c.h.b16 %v281
        %v381 = vunpack.c.l.b16 %v282
        %v382 = vunpack.c.h.b16 %v282
        %v383 = vunpack.c.l.b16 %v283
        %v384 = vunpack.c.h.b16 %v283
        %v385 = vunpack.c.l.b16 %v284
        %v386 = vunpack.c.h.b16 %v284
        %v387 = vunpack.c.l.b16 %v285
        %v388 = vunpack.c.h.b16 %v285
        %v389 = vunpack.c.l.b16 %v286
        %v390 = vunpack.c.h.b16 %v286
        %v391 = vunpack.c.l.b16 %v287
        %v392 = vunpack.c.h.b16 %v287
        %v393 = vunpack.c.l.b16 %v288
        %v394 = vunpack.c.h.b16 %v288
        %v395 = vunpack.c.l.b16 %v289
        %v396 = vunpack.c.h.b16 %v289
        %v397 = vunpack.c.l.b16 %v290
        %v398 = vunpack.c.h.b16 %v290
        %v399 = vunpack.c.l.b16 %v291
        %v400 = vunpack.c.h.b16 %v291
        %v401 = vunpack.c.l.b16 %v292
        %v402 = vunpack.c.h.b16 %v292
        %v403 = vunpack.c.l.b16 %v293
        %v404 = vunpack.c.h.b16 %v293
        %v405 = vunpack.c.l.b16 %v294
        %v406 = vunpack.c.h.b16 %v294
        %v407 = vunpack.c.l.b16 %v295
        %v408 = vunpack.c.h.b16 %v295
        %v409 = vunpack.c.l.b16 %v296
        %v410 = vunpack.c.h.b16 %v296
        %v411 = vunpack.c.l.b16 %v297
        %v412 = vunpack.c.h.b16 %v297
        %v413 = vunpack.c.l.b16 %v298
        %v414 = vunpack.c.h.b16 %v298
        %v415 = vunpack.c.l.b16 %v299
        %v416 = vunpack.c.h.b16 %v299
        %v417 = vunpack.c.l.b16 %v300
        %v418 = vunpack.c.h.b16 %v300
        %v419 = vunpack.c.l.b16 %v301
        %v420 = vunpack.c.h.b16 %v301
        %v421 = vunpack.c.l.b16 %v302
        %v422 = vunpack.c.h.b16 %v302
        %v423 = vunpack.c.l.b16 %v303
        %v424 = vunpack.c.h.b16 %v303
        %v425 = vunpack.c.l.b16 %v304
        %v426 = vunpack.c.h.b16 %v304
        %v427 = vunpack.c.l.b16 %v305
        %v428 = vunpack.c.h.b16 %v305
        %v429 = vunpack.c.l.b16 %v306
        %v430 = vunpack.c.h.b16 %v306
        %v431 = vunpack.c.l.b16 %v307
        %v432 = vunpack.c.h.b16 %v307
        %v433 = vpack.c.b16 %v361, %v353
        %v434 = vpack.c.b16 %v362, %v354
        %v435 = vpack.c.b16 %v363, %v355
        %v436 = vpack.c.b16 %v364, %v356
        %v437 = vpack.c.b16 %v365, %v357
        %v438 = vpack.c.b16 %v366, %v358
        %v439 = vpack.c.b16 %v367, %v359
        %v440 = vpack.c.b16 %v368, %v360
        %v441 = vpack.c.b16 %v377, %v369
        %v442 = vpack.c.b16 %v378, %v370
        %v443 = vpack.c.b16 %v379, %v371
        %v444 = vpack.c.b16 %v380, %v372
        %v445 = vpack.c.b16 %v381, %v373
        %v446 = vpack.c.b16 %v382, %v374
        %v447 = vpack.c.b16 %v383, %v375
        %v448 = vpack.c.b16 %v384, %v376
        %v449 = vpack.c.b16 %v393, %v385
        %v450 = vpack.c.b16 %v394, %v386
        %v451 = vpack.c.b16 %v395, %v387
        %v452 = vpack.c.b16 %v396, %v388
        %v453 = vpack.c.b16 %v397, %v389
        %v454 = vpack.c.b16 %v398, %v390
        %v455 = vpack.c.b16 %v399, %v391
        %v456 = vpack.c.b16 %v400, %v392
        %v457 = vpack.c.b16 %v409, %v401
        %v458 = vpack.c.b16 %v410, %v402
        %v459 = vpack.c.b16 %v411, %v403
        %v460 = vpack.c.b16 %v412, %v404
        %v461 = vpack.c.b16 %v413, %v405
        %v462 = vpack.c.b16 %v414, %v406
        %v463 = vpack.c.b16 %v415, %v407
        %v464 = vpack.c.b16 %v416, %v408
        %v465 = vpack.c.b16 %v425, %v417
        %v466 = vpack.c.b16 %v426, %v418
        %v467 = vpack.c.b16 %v427, %v419
        %v468 = vpack.c.b16 %v428, %v420
        %v469 = vpack.c.b16 %v429, %v421
        %v470 = vpack.c.b16 %v430, %v422
        %v471 = vpack.c.b16 %v431, %v423
        %v472 = vpack.c.b16 %v432, %v424
        %vm513 = vcmask 654336
        %v515 = vsel %vm513, %v312, 0
        %517 = vmatprep.subr.bf16.mxu0 0
        %518 = vmatpush1.bf16.msra.mxu0 0
        %519 = vmatprep.subr.bf16.mxu0 0
        %520 = vmatpush1.bf16.msra.mxu0 0
        %521 = vmatprep.subr.bf16.mxu0 0
        %522 = vmatpush1.bf16.msra.mxu0 0
        %523 = vmatprep.subr.bf16.mxu0 %v466
        %524 = vmatpush1.bf16.msra.mxu0 %v465
        %525 = vmatprep.subr.bf16.mxu0 %v458
        %526 = vmatpush1.bf16.msra.mxu0 %v457
        %527 = vmatprep.subr.bf16.mxu0 %v450
        %528 = vmatpush1.bf16.msra.mxu0 %v449
        %529 = vmatprep.subr.bf16.mxu0 %v442
        %530 = vmatpush1.bf16.msra.mxu0 %v441
        %531 = vmatprep.subr.bf16.mxu0 %v434
        %532 = vmatpush1.bf16.msra.mxu0 %v433
        %533 = vmatprep.subr.bf16.mxu0 0
        %534 = vmatpush2.bf16.msra.mxu0 0
        %535 = vmatprep.subr.bf16.mxu0 0
        %536 = vmatpush2.bf16.msra.mxu0 0
        %537 = vmatprep.subr.bf16.mxu0 0
        %538 = vmatpush2.bf16.msra.mxu0 0
        %539 = vmatprep.subr.bf16.mxu0 0
        %540 = vmatpush2.bf16.msra.mxu0 0
        %541 = vmatprep.subr.bf16.mxu0 0
        %542 = vmatpush2.bf16.msra.mxu0 0
        %543 = vmatprep.subr.bf16.mxu0 0
        %544 = vmatpush2.bf16.msra.mxu0 0
        %545 = vmatprep.subr.bf16.mxu0 0
        %546 = vmatpush2.bf16.msra.mxu0 0
        %547 = vmatprep.subr.bf16.mxu0 0
        %548 = vmatpush2.bf16.msra.mxu0 0
        %549 = vmatprep.mubr.bf16.mxu0 0
        %550 = vmatmul.mubr.bf16.gmra.mxu0 %v515
        %v551 = vpop.f32.mrf.mxu0
        %v552 = vadd.f32 0.0, %v551
        %v553 = vpop.f32.mrf.mxu0
        %v554 = vadd.f32 0.0, %v553
        %v555 = vpop.f32.mrf.mxu0
        %v556 = vadd.f32 0.0, %v555
        %v557 = vpop.f32.mrf.mxu0
        %v558 = vadd.f32 0.0, %v557
        %559 = vdwg.mxu0
        %560 = vmatprep.subr.bf16.mxu0 0
        %561 = vmatpush1.bf16.msra.mxu0 0
        %562 = vmatprep.subr.bf16.mxu0 0
        %563 = vmatpush1.bf16.msra.mxu0 0
        %564 = vmatprep.subr.bf16.mxu0 0
        %565 = vmatpush1.bf16.msra.mxu0 0
        %566 = vmatprep.subr.bf16.mxu0 %v468
        %567 = vmatpush1.bf16.msra.mxu0 %v467
        %568 = vmatprep.subr.bf16.mxu0 %v460
        %569 = vmatpush1.bf16.msra.mxu0 %v459
        %570 = vmatprep.subr.bf16.mxu0 %v452
        %571 = vmatpush1.bf16.msra.mxu0 %v451
        %572 = vmatprep.subr.bf16.mxu0 %v444
        %573 = vmatpush1.bf16.msra.mxu0 %v443
        %574 = vmatprep.subr.bf16.mxu0 %v436
        %575 = vmatpush1.bf16.msra.mxu0 %v435
        %576 = vmatprep.subr.bf16.mxu0 0
        %577 = vmatpush2.bf16.msra.mxu0 0
        %578 = vmatprep.subr.bf16.mxu0 0
        %579 = vmatpush2.bf16.msra.mxu0 0
        %580 = vmatprep.subr.bf16.mxu0 0
        %581 = vmatpush2.bf16.msra.mxu0 0
        %582 = vmatprep.subr.bf16.mxu0 0
        %583 = vmatpush2.bf16.msra.mxu0 0
        %584 = vmatprep.subr.bf16.mxu0 0
        %585 = vmatpush2.bf16.msra.mxu0 0
        %586 = vmatprep.subr.bf16.mxu0 0
        %587 = vmatpush2.bf16.msra.mxu0 0
        %588 = vmatprep.subr.bf16.mxu0 0
        %589 = vmatpush2.bf16.msra.mxu0 0
        %590 = vmatprep.subr.bf16.mxu0 0
        %591 = vmatpush2.bf16.msra.mxu0 0
        %592 = vmatprep.mubr.bf16.mxu0 0
        %593 = vmatmul.mubr.bf16.gmra.mxu0 %v515
        %v594 = vpop.f32.mrf.mxu0
        %v595 = vadd.f32 0.0, %v594
        %v596 = vpop.f32.mrf.mxu0
        %v597 = vadd.f32 0.0, %v596
        %v598 = vpop.f32.mrf.mxu0
        %v599 = vadd.f32 0.0, %v598
        %v600 = vpop.f32.mrf.mxu0
        %v601 = vadd.f32 0.0, %v600
        %602 = vdwg.mxu0
        %603 = vmatprep.subr.bf16.mxu0 0
        %604 = vmatpush1.bf16.msra.mxu0 0
        %605 = vmatprep.subr.bf16.mxu0 0
        %606 = vmatpush1.bf16.msra.mxu0 0
        %607 = vmatprep.subr.bf16.mxu0 0
        %608 = vmatpush1.bf16.msra.mxu0 0
        %609 = vmatprep.subr.bf16.mxu0 %v470
        %610 = vmatpush1.bf16.msra.mxu0 %v469
        %611 = vmatprep.subr.bf16.mxu0 %v462
        %612 = vmatpush1.bf16.msra.mxu0 %v461
        %613 = vmatprep.subr.bf16.mxu0 %v454
        %614 = vmatpush1.bf16.msra.mxu0 %v453
        %615 = vmatprep.subr.bf16.mxu0 %v446
        %616 = vmatpush1.bf16.msra.mxu0 %v445
        %617 = vmatprep.subr.bf16.mxu0 %v438
        %618 = vmatpush1.bf16.msra.mxu0 %v437
        %619 = vmatprep.subr.bf16.mxu0 0
        %620 = vmatpush2.bf16.msra.mxu0 0
        %621 = vmatprep.subr.bf16.mxu0 0
        %622 = vmatpush2.bf16.msra.mxu0 0
        %623 = vmatprep.subr.bf16.mxu0 0
        %624 = vmatpush2.bf16.msra.mxu0 0
        %625 = vmatprep.subr.bf16.mxu0 0
        %626 = vmatpush2.bf16.msra.mxu0 0
        %627 = vmatprep.subr.bf16.mxu0 0
        %628 = vmatpush2.bf16.msra.mxu0 0
        %629 = vmatprep.subr.bf16.mxu0 0
        %630 = vmatpush2.bf16.msra.mxu0 0
        %631 = vmatprep.subr.bf16.mxu0 0
        %632 = vmatpush2.bf16.msra.mxu0 0
        %633 = vmatprep.subr.bf16.mxu0 0
        %634 = vmatpush2.bf16.msra.mxu0 0
        %635 = vmatprep.mubr.bf16.mxu0 0
        %636 = vmatmul.mubr.bf16.gmra.mxu0 %v515
        %v637 = vpop.f32.mrf.mxu0
        %v638 = vadd.f32 0.0, %v637
        %v639 = vpop.f32.mrf.mxu0
        %v640 = vadd.f32 0.0, %v639
        %v641 = vpop.f32.mrf.mxu0
        %v642 = vadd.f32 0.0, %v641
        %v643 = vpop.f32.mrf.mxu0
        %v644 = vadd.f32 0.0, %v643
        %645 = vdwg.mxu0
        %646 = vmatprep.subr.bf16.mxu0 0
        %647 = vmatpush1.bf16.msra.mxu0 0
        %648 = vmatprep.subr.bf16.mxu0 0
        %649 = vmatpush1.bf16.msra.mxu0 0
        %650 = vmatprep.subr.bf16.mxu0 0
        %651 = vmatpush1.bf16.msra.mxu0 0
        %652 = vmatprep.subr.bf16.mxu0 %v472
        %653 = vmatpush1.bf16.msra.mxu0 %v471
        %654 = vmatprep.subr.bf16.mxu0 %v464
        %655 = vmatpush1.bf16.msra.mxu0 %v463
        %656 = vmatprep.subr.bf16.mxu0 %v456
        %657 = vmatpush1.bf16.msra.mxu0 %v455
        %658 = vmatprep.subr.bf16.mxu0 %v448
        %659 = vmatpush1.bf16.msra.mxu0 %v447
        %660 = vmatprep.subr.bf16.mxu0 %v440
        %661 = vmatpush1.bf16.msra.mxu0 %v439
        %662 = vmatprep.subr.bf16.mxu0 0
        %663 = vmatpush2.bf16.msra.mxu0 0
        %664 = vmatprep.subr.bf16.mxu0 0
        %665 = vmatpush2.bf16.msra.mxu0 0
        %666 = vmatprep.subr.bf16.mxu0 0
        %667 = vmatpush2.bf16.msra.mxu0 0
        %668 = vmatprep.subr.bf16.mxu0 0
        %669 = vmatpush2.bf16.msra.mxu0 0
        %670 = vmatprep.subr.bf16.mxu0 0
        %671 = vmatpush2.bf16.msra.mxu0 0
        %672 = vmatprep.subr.bf16.mxu0 0
        %673 = vmatpush2.bf16.msra.mxu0 0
        %674 = vmatprep.subr.bf16.mxu0 0
        %675 = vmatpush2.bf16.msra.mxu0 0
        %676 = vmatprep.subr.bf16.mxu0 0
        %677 = vmatpush2.bf16.msra.mxu0 0
        %678 = vmatprep.mubr.bf16.mxu0 0
        %679 = vmatmul.mubr.bf16.gmra.mxu0 %v515
        %v680 = vpop.f32.mrf.mxu0
        %v681 = vadd.f32 0.0, %v680
        %v682 = vpop.f32.mrf.mxu0
        %v683 = vadd.f32 0.0, %v682
        %v684 = vpop.f32.mrf.mxu0
        %v685 = vadd.f32 0.0, %v684
        %v686 = vpop.f32.mrf.mxu0
        %v687 = vadd.f32 0.0, %v686
        %688 = vdwg.mxu0
        %v689 = vmax.f32 %v552, %v595
        %v690 = vmax.f32 %v554, %v597
        %v691 = vmax.f32 %v556, %v599
        %v692 = vmax.f32 %v558, %v601
        %v693 = vmax.f32 %v638, %v681
        %v694 = vmax.f32 %v640, %v683
        %v695 = vmax.f32 %v642, %v685
        %v696 = vmax.f32 %v644, %v687
        %v697 = vmax.f32 %v689, %v693
        %v698 = vmax.f32 %v690, %v694
        %v699 = vmax.f32 %v691, %v695
        %v700 = vmax.f32 %v692, %v696
        %v701 = vld [vmem:[%s2] sm:$0xff]
        %v702 = vld [vmem:[%s2 + $0x8] sm:$0xff]
        %704 = vset.pattern.permute.xlu0 0
        %705 = vperm.xlu0 %704, %v701
        %v706 = vpop.permute.xlu0 %705
        %709 = vset.pattern.permute.xlu0 0
        %710 = vperm.xlu0 %709, %v702
        %v711 = vpop.permute.xlu0 %710
        %v713 = vadd.f32 %v697, %v706
        %v714 = vadd.f32 %v698, %v706
        %v715 = vadd.f32 %v699, %v711
        %v716 = vadd.f32 %v700, %v711
        %v717 = vmax.f32 %v713, 0.0
        %v718 = vmax.f32 %v714, 0.0
        %v719 = vmax.f32 %v715, 0.0
        %v720 = vmax.f32 %v716, 0.0
        %v721 = vpack.c.bf16 %v719, %v717
        %v722 = vpack.c.bf16 %v720, %v718
        %v725 = vunpack.c.l.b16 %v721
        %v726 = vunpack.c.l.b16 %v722
        %v727 = vunpack.c.h.b16 %v721
        %v728 = vunpack.c.h.b16 %v722
        %v729 = vpack.c.b16 %v726, %v725
        %v730 = vpack.c.b16 %v728, %v727
        %733 = vst [vmem:[%s262] sm:$0xff] %v729
        %734 = vst [vmem:[%s262 + $0x8] sm:$0xff] %v730
        %s735 = sand.u32 %s90, 1
        %s736 = sand.u32 %s90, 1
        %s737 = smul.addr %s736, 16
        %s738 = scalar_lea.vmem [#allocation3], %s737
        // Predicated region
        $region56: #{model_forward.3} parent=50 // pred_check
          %p739 = pneg %p100
        $region57: #{model_forward.3} parent=50 // pred_check_branch
          %741 = sbr.rel (%p739) target = $region59
        $region58: #{model_forward.3} parent=50 // pred_region
          %s742 = smul.u32 2, %s14
          %s743 = smul.addr %s742, 4
          %s744 = scalar_lea.vmem %s3, %s743
          // Predicated region
          $region60: #{model_forward.3} parent=58 // pred_check
            _
          $region61: #{model_forward.3} parent=58 // pred_check_branch
            %746 = sbr.rel (0) target = $region63
          $region62: #{model_forward.3} parent=58 // pred_region
            // Predicated region
            $region64: #{model_forward.3} parent=62 // pred_check
              _
            $region65: #{model_forward.3} parent=62 // pred_check_branch
              %748 = sbr.rel (0) target = $region67
            $region66: #{model_forward.3} parent=62 // pred_region
              // Predicated region
              $region79: #{model_forward.3} parent=66 // pred_check
                _
              $region80: #{model_forward.3} parent=66 // pred_check_branch
                %766 = sbr.rel (0) target = $region82
              $region81: #{model_forward.3} parent=66 // pred_region
                loop: start=0, step=1, limit=1
                $region83: #{model_forward.3} parent=81 // loop_pre_header
                  _
                $region84: #{model_forward.3} parent=81 // loop_header
                  %s768 = sphi 0, %s772
                  %p769 = scmp.ge.s32.totalorder %s768, 1
                  %s773 = sphi %s738, %s738
                  %s774 = sphi %s744, %s744
                $region85: #{model_forward.3} parent=81 // loop_header_branch
                  %771 = sbr.rel (%p769) target = $region89
                $region86: #{model_forward.3} parent=81 // loop_body
                  %v775 = vld [vmem:[%s773] sm:$0xff]
                  %776 = vst [vmem:[%s774] sm:$0xff] %v775
                  %v777 = vld [vmem:[%s773 + $0x8] sm:$0xff]
                  %778 = vst [vmem:[%s774 + $0x10] sm:$0xff] %v777
                $region87: #{model_forward.3} parent=81 // loop_footer
                  %s772 = sadd.s32 1, %s768
                $region88: #{model_forward.3} parent=81 // loop_footer_branch
                  %767 = sbr.rel target = $region84
                $region89: #{model_forward.3} parent=81 // loop_exit
                  _
              $region82: #{model_forward.3} parent=66 // pred_fallthru
                _
              // Predicated region
              $region90: #{model_forward.3} parent=66 // pred_check
                _
              $region91: #{model_forward.3} parent=66 // pred_check_branch
                %780 = sbr.rel target = $region93
              $region92: #{model_forward.3} parent=66 // pred_region
                _
              $region93: #{model_forward.3} parent=66 // pred_fallthru
                _
            $region67: #{model_forward.3} parent=62 // pred_fallthru
              _
            // Predicated region
            $region68: #{model_forward.3} parent=62 // pred_check
              _
            $region69: #{model_forward.3} parent=62 // pred_check_branch
              %750 = sbr.rel target = $region71
            $region70: #{model_forward.3} parent=62 // pred_region
              %s752 = ssub.s32 256, 1
              loop: start=0, step=1, limit=1
              $region72: #{model_forward.3} parent=70 // loop_pre_header
                _
              $region73: #{model_forward.3} parent=70 // loop_header
                %s754 = sphi 0, %s758
                %p755 = scmp.ge.s32.totalorder %s754, 1
                %s759 = sphi %s738, %s738
                %s760 = sphi %s744, %s744
              $region74: #{model_forward.3} parent=70 // loop_header_branch
                %757 = sbr.rel (%p755) target = $region78
              $region75: #{model_forward.3} parent=70 // loop_body
                %v761 = vld [vmem:[%s759] sm:%s752]
                %762 = vst [vmem:[%s760] sm:%s752] %v761
                %v763 = vld [vmem:[%s759 + $0x8] sm:%s752]
                %764 = vst [vmem:[%s760 + $0x10] sm:%s752] %v763
              $region76: #{model_forward.3} parent=70 // loop_footer
                %s758 = sadd.s32 1, %s754
              $region77: #{model_forward.3} parent=70 // loop_footer_branch
                %753 = sbr.rel target = $region73
              $region78: #{model_forward.3} parent=70 // loop_exit
                _
            $region71: #{model_forward.3} parent=62 // pred_fallthru
              _
          $region63: #{model_forward.3} parent=58 // pred_fallthru
            _
          %781 = vnop
        $region59: #{model_forward.3} parent=50 // pred_fallthru
          _
      $region51: #{model_forward.3} parent=5 // pred_fallthru
        _
      %p782 = scmp.le.s32.totalorder 2, %s9
      // Predicated region
      $region94: #{model_forward.3} parent=5 // pred_check
        %p783 = pneg %p782
      $region95: #{model_forward.3} parent=5 // pred_check_branch
        %785 = sbr.rel (%p783) target = $region97
      $region96: #{model_forward.3} parent=5 // pred_region
        %s786 = ssub.s32 %s9, 2
        // Predicated region
        $region98: #{model_forward.3} parent=96 // pred_check
          %p787 = pneg %p106
        $region99: #{model_forward.3} parent=96 // pred_check_branch
          %789 = sbr.rel (%p787) target = $region101
        $region100: #{model_forward.3} parent=96 // pred_region
          %s790 = sand.u32 %s91, 1
          %s791 = sand.u32 %s91, 1
          %s792 = smul.addr %s791, 16
          %s793 = scalar_lea.vmem [#allocation3], %s792
        $region101: #{model_forward.3} parent=96 // pred_fallthru
          _
      $region97: #{model_forward.3} parent=5 // pred_fallthru
        _
    $region6: #{model_forward.3} parent=1 // loop_footer
      %s13 = sadd.s32 1, %s9
    $region7: #{model_forward.3} parent=1 // loop_footer_branch
      %8 = sbr.rel target = $region3
    $region8: #{model_forward.3} parent=1 // loop_exit
      _

// kernel: model_forward.4
$region0: #{model_forward.4}
  #allocation0 [shape = 'u32[]', space=smem, size = 0x4, offset = 0x4, fixed_abs, tag = 'smem constant byte address 0x4 - core index']
  #allocation1 [shape = 'u32[144,128]{1,0:T(1,128)}', space=vmem, size = 0x12000, scoped, tag = 'internal scratch']
  %s0 = inlined_call_operand.vmem [shape: bf16[160,512], index: 0, kind: input, shape index: {}]
  %s1 = inlined_call_operand.vmem [shape: bf16[16,160], index: 1, kind: input, shape index: {}]
  %s2 = inlined_call_operand.vmem [shape: f32[16,1], index: 2, kind: input, shape index: {}]
  %s3 = inlined_call_operand.vmem [shape: bf16[16,128], index: 3, kind: output, shape index: {}]
  %s4 = sld [smem:[#allocation0]]
  $region22: #{model_forward.4} parent=0
    _
  %s6 = ssub.s32 1, %s4
  %s7 = scalar_select 0, %s6, %s4
  // Predicated region
  $region2: #{model_forward.4} parent=0 // pred_check
    _
  $region3: #{model_forward.4} parent=0 // pred_check_branch
    %9 = sbr.rel (0) target = $region5
  $region4: #{model_forward.4} parent=0 // pred_region
    _
  $region5: #{model_forward.4} parent=0 // pred_fallthru
    _
  // Predicated region
  $region6: #{model_forward.4} parent=0 // pred_check
    _
  $region7: #{model_forward.4} parent=0 // pred_check_branch
    %11 = sbr.rel (0) target = $region9
  $region8: #{model_forward.4} parent=0 // pred_region
    _
  $region9: #{model_forward.4} parent=0 // pred_fallthru
    _
  // Predicated region
  $region10: #{model_forward.4} parent=0 // pred_check
    _
  $region11: #{model_forward.4} parent=0 // pred_check_branch
    %13 = sbr.rel (0) target = $region13
  $region12: #{model_forward.4} parent=0 // pred_region
    _
  $region13: #{model_forward.4} parent=0 // pred_fallthru
    _
  %v15 = vld [vmem:[%s1] sm:$0xff]
  %v16 = vld [vmem:[%s1 + $0x8] sm:$0xff]
  %v17 = vld [vmem:[%s0] sm:$0xff]
  %v18 = vld [vmem:[%s0 + $0x8] sm:$0xff]
  %v19 = vld [vmem:[%s0 + $0x10] sm:$0xff]
  %v20 = vld [vmem:[%s0 + $0x18] sm:$0xff]
  %v21 = vld [vmem:[%s0 + $0x20] sm:$0xff]
  %v22 = vld [vmem:[%s0 + $0x28] sm:$0xff]
  %v23 = vld [vmem:[%s0 + $0x30] sm:$0xff]
  %v24 = vld [vmem:[%s0 + $0x38] sm:$0xff]
  %v25 = vld [vmem:[%s0 + $0x40] sm:$0xff]
  %v26 = vld [vmem:[%s0 + $0x48] sm:$0xff]
  %v27 = vld [vmem:[%s0 + $0x50] sm:$0xff]
  %v28 = vld [vmem:[%s0 + $0x58] sm:$0xff]
  %v29 = vld [vmem:[%s0 + $0x60] sm:$0xff]
  %v30 = vld [vmem:[%s0 + $0x68] sm:$0xff]
  %v31 = vld [vmem:[%s0 + $0x70] sm:$0xff]
  %v32 = vld [vmem:[%s0 + $0x78] sm:$0xff]
  %v33 = vld [vmem:[%s0 + $0x80] sm:$0xff]
  %v34 = vld [vmem:[%s0 + $0x88] sm:$0xff]
  %v35 = vld [vmem:[%s0 + $0x90] sm:$0xff]
  %v36 = vld [vmem:[%s0 + $0x98] sm:$0xff]
  %v37 = vld [vmem:[%s0 + $0xa0] sm:$0xff]
  %v38 = vld [vmem:[%s0 + $0xa8] sm:$0xff]
  %v39 = vld [vmem:[%s0 + $0xb0] sm:$0xff]
  %v40 = vld [vmem:[%s0 + $0xb8] sm:$0xff]
  %v41 = vld [vmem:[%s0 + $0xc0] sm:$0xff]
  %v42 = vld [vmem:[%s0 + $0xc8] sm:$0xff]
  %v43 = vld [vmem:[%s0 + $0xd0] sm:$0xff]
  %v44 = vld [vmem:[%s0 + $0xd8] sm:$0xff]
  %v45 = vld [vmem:[%s0 + $0xe0] sm:$0xff]
  %v46 = vld [vmem:[%s0 + $0xe8] sm:$0xff]
  %v47 = vld [vmem:[%s0 + $0xf0] sm:$0xff]
  %v48 = vld [vmem:[%s0 + $0xf8] sm:$0xff]
  %v49 = vld [vmem:[%s0 + $0x100] sm:$0xff]
  %v50 = vld [vmem:[%s0 + $0x108] sm:$0xff]
  %v51 = vld [vmem:[%s0 + $0x110] sm:$0xff]
  %v52 = vld [vmem:[%s0 + $0x118] sm:$0xff]
  %v53 = vld [vmem:[%s0 + $0x120] sm:$0xff]
  %v54 = vld [vmem:[%s0 + $0x128] sm:$0xff]
  %v55 = vld [vmem:[%s0 + $0x130] sm:$0xff]
  %v56 = vld [vmem:[%s0 + $0x138] sm:$0xff]
  %v59 = vunpack.c.l.b16 %v15
  %v60 = vunpack.c.h.b16 %v15
  %v61 = vunpack.c.l.b16 %v16
  %v62 = vunpack.c.h.b16 %v16
  %v63 = vpack.c.b16 %v61, %v59
  %v64 = vpack.c.b16 %v62, %v60
  %v106 = vunpack.c.l.b16 %v17
  %v107 = vunpack.c.h.b16 %v17
  %v108 = vunpack.c.l.b16 %v18
  %v109 = vunpack.c.h.b16 %v18
  %v110 = vunpack.c.l.b16 %v19
  %v111 = vunpack.c.h.b16 %v19
  %v112 = vunpack.c.l.b16 %v20
  %v113 = vunpack.c.h.b16 %v20
  %v114 = vunpack.c.l.b16 %v21
  %v115 = vunpack.c.h.b16 %v21
  %v116 = vunpack.c.l.b16 %v22
  %v117 = vunpack.c.h.b16 %v22
  %v118 = vunpack.c.l.b16 %v23
  %v119 = vunpack.c.h.b16 %v23
  %v120 = vunpack.c.l.b16 %v24
  %v121 = vunpack.c.h.b16 %v24
  %v122 = vunpack.c.l.b16 %v25
  %v123 = vunpack.c.h.b16 %v25
  %v124 = vunpack.c.l.b16 %v26
  %v125 = vunpack.c.h.b16 %v26
  %v126 = vunpack.c.l.b16 %v27
  %v127 = vunpack.c.h.b16 %v27
  %v128 = vunpack.c.l.b16 %v28
  %v129 = vunpack.c.h.b16 %v28
  %v130 = vunpack.c.l.b16 %v29
  %v131 = vunpack.c.h.b16 %v29
  %v132 = vunpack.c.l.b16 %v30
  %v133 = vunpack.c.h.b16 %v30
  %v134 = vunpack.c.l.b16 %v31
  %v135 = vunpack.c.h.b16 %v31
  %v136 = vunpack.c.l.b16 %v32
  %v137 = vunpack.c.h.b16 %v32
  %v138 = vunpack.c.l.b16 %v33
  %v139 = vunpack.c.h.b16 %v33
  %v140 = vunpack.c.l.b16 %v34
  %v141 = vunpack.c.h.b16 %v34
  %v142 = vunpack.c.l.b16 %v35
  %v143 = vunpack.c.h.b16 %v35
  %v144 = vunpack.c.l.b16 %v36
  %v145 = vunpack.c.h.b16 %v36
  %v146 = vunpack.c.l.b16 %v37
  %v147 = vunpack.c.h.b16 %v37
  %v148 = vunpack.c.l.b16 %v38
  %v149 = vunpack.c.h.b16 %v38
  %v150 = vunpack.c.l.b16 %v39
  %v151 = vunpack.c.h.b16 %v39
  %v152 = vunpack.c.l.b16 %v40
  %v153 = vunpack.c.h.b16 %v40
  %v154 = vunpack.c.l.b16 %v41
  %v155 = vunpack.c.h.b16 %v41
  %v156 = vunpack.c.l.b16 %v42
  %v157 = vunpack.c.h.b16 %v42
  %v158 = vunpack.c.l.b16 %v43
  %v159 = vunpack.c.h.b16 %v43
  %v160 = vunpack.c.l.b16 %v44
  %v161 = vunpack.c.h.b16 %v44
  %v162 = vunpack.c.l.b16 %v45
  %v163 = vunpack.c.h.b16 %v45
  %v164 = vunpack.c.l.b16 %v46
  %v165 = vunpack.c.h.b16 %v46
  %v166 = vunpack.c.l.b16 %v47
  %v167 = vunpack.c.h.b16 %v47
  %v168 = vunpack.c.l.b16 %v48
  %v169 = vunpack.c.h.b16 %v48
  %v170 = vunpack.c.l.b16 %v49
  %v171 = vunpack.c.h.b16 %v49
  %v172 = vunpack.c.l.b16 %v50
  %v173 = vunpack.c.h.b16 %v50
  %v174 = vunpack.c.l.b16 %v51
  %v175 = vunpack.c.h.b16 %v51
  %v176 = vunpack.c.l.b16 %v52
  %v177 = vunpack.c.h.b16 %v52
  %v178 = vunpack.c.l.b16 %v53
  %v179 = vunpack.c.h.b16 %v53
  %v180 = vunpack.c.l.b16 %v54
  %v181 = vunpack.c.h.b16 %v54
  %v182 = vunpack.c.l.b16 %v55
  %v183 = vunpack.c.h.b16 %v55
  %v184 = vunpack.c.l.b16 %v56
  %v185 = vunpack.c.h.b16 %v56
  %v186 = vpack.c.b16 %v110, %v106
  %v187 = vpack.c.b16 %v111, %v107
  %v188 = vpack.c.b16 %v112, %v108
  %v189 = vpack.c.b16 %v113, %v109
  %v190 = vpack.c.b16 %v118, %v114
  %v191 = vpack.c.b16 %v119, %v115
  %v192 = vpack.c.b16 %v120, %v116
  %v193 = vpack.c.b16 %v121, %v117
  %v194 = vpack.c.b16 %v126, %v122
  %v195 = vpack.c.b16 %v127, %v123
  %v196 = vpack.c.b16 %v128, %v124
  %v197 = vpack.c.b16 %v129, %v125
  %v198 = vpack.c.b16 %v134, %v130
  %v199 = vpack.c.b16 %v135, %v131
  %v200 = vpack.c.b16 %v136, %v132
  %v201 = vpack.c.b16 %v137, %v133
  %v202 = vpack.c.b16 %v142, %v138
  %v203 = vpack.c.b16 %v143, %v139
  %v204 = vpack.c.b16 %v144, %v140
  %v205 = vpack.c.b16 %v145, %v141
  %v206 = vpack.c.b16 %v150, %v146
  %v207 = vpack.c.b16 %v151, %v147
  %v208 = vpack.c.b16 %v152, %v148
  %v209 = vpack.c.b16 %v153, %v149
  %v210 = vpack.c.b16 %v158, %v154
  %v211 = vpack.c.b16 %v159, %v155
  %v212 = vpack.c.b16 %v160, %v156
  %v213 = vpack.c.b16 %v161, %v157
  %v214 = vpack.c.b16 %v166, %v162
  %v215 = vpack.c.b16 %v167, %v163
  %v216 = vpack.c.b16 %v168, %v164
  %v217 = vpack.c.b16 %v169, %v165
  %v218 = vpack.c.b16 %v174, %v170
  %v219 = vpack.c.b16 %v175, %v171
  %v220 = vpack.c.b16 %v176, %v172
  %v221 = vpack.c.b16 %v177, %v173
  %v222 = vpack.c.b16 %v182, %v178
  %v223 = vpack.c.b16 %v183, %v179
  %v224 = vpack.c.b16 %v184, %v180
  %v225 = vpack.c.b16 %v185, %v181
  %vm266 = vcmask 261120
  %v268 = vsel %vm266, %v64, 0
  %270 = vmatprep.subr.bf16.mxu0 %v215
  %271 = vmatpush1.bf16.msra.mxu0 %v214
  %272 = vmatprep.subr.bf16.mxu0 %v211
  %273 = vmatpush1.bf16.msra.mxu0 %v210
  %274 = vmatprep.subr.bf16.mxu0 %v207
  %275 = vmatpush1.bf16.msra.mxu0 %v206
  %276 = vmatprep.subr.bf16.mxu0 %v203
  %277 = vmatpush1.bf16.msra.mxu0 %v202
  %278 = vmatprep.subr.bf16.mxu0 %v199
  %279 = vmatpush1.bf16.msra.mxu0 %v198
  %280 = vmatprep.subr.bf16.mxu0 %v195
  %281 = vmatpush1.bf16.msra.mxu0 %v194
  %282 = vmatprep.subr.bf16.mxu0 %v191
  %283 = vmatpush1.bf16.msra.mxu0 %v190
  %284 = vmatprep.subr.bf16.mxu0 %v187
  %285 = vmatpush1.bf16.msra.mxu0 %v186
  %286 = vmatprep.subr.bf16.mxu0 0
  %287 = vmatpush2.bf16.msra.mxu0 0
  %288 = vmatprep.subr.bf16.mxu0 0
  %289 = vmatpush2.bf16.msra.mxu0 0
  %290 = vmatprep.subr.bf16.mxu0 0
  %291 = vmatpush2.bf16.msra.mxu0 0
  %292 = vmatprep.subr.bf16.mxu0 0
  %293 = vmatpush2.bf16.msra.mxu0 0
  %294 = vmatprep.subr.bf16.mxu0 0
  %295 = vmatpush2.bf16.msra.mxu0 0
  %296 = vmatprep.subr.bf16.mxu0 0
  %297 = vmatpush2.bf16.msra.mxu0 0
  %298 = vmatprep.subr.bf16.mxu0 %v223
  %299 = vmatpush2.bf16.msra.mxu0 %v222
  %300 = vmatprep.subr.bf16.mxu0 %v219
  %301 = vmatpush2.bf16.msra.mxu0 %v218
  %302 = vmatprep.mubr.bf16.mxu0 %v268
  %303 = vmatmul.mubr.bf16.gmra.mxu0 %v63
  %v304 = vpop.f32.mrf.mxu0
  %v305 = vadd.f32 0.0, %v304
  %v306 = vpop.f32.mrf.mxu0
  %v307 = vadd.f32 0.0, %v306
  %v308 = vpop.f32.mrf.mxu0
  %v309 = vadd.f32 0.0, %v308
  %v310 = vpop.f32.mrf.mxu0
  %v311 = vadd.f32 0.0, %v310
  %312 = vdwg.mxu0
  %313 = vmatprep.subr.bf16.mxu0 %v217
  %314 = vmatpush1.bf16.msra.mxu0 %v216
  %315 = vmatprep.subr.bf16.mxu0 %v213
  %316 = vmatpush1.bf16.msra.mxu0 %v212
  %317 = vmatprep.subr.bf16.mxu0 %v209
  %318 = vmatpush1.bf16.msra.mxu0 %v208
  %319 = vmatprep.subr.bf16.mxu0 %v205
  %320 = vmatpush1.bf16.msra.mxu0 %v204
  %321 = vmatprep.subr.bf16.mxu0 %v201
  %322 = vmatpush1.bf16.msra.mxu0 %v200
  %323 = vmatprep.subr.bf16.mxu0 %v197
  %324 = vmatpush1.bf16.msra.mxu0 %v196
  %325 = vmatprep.subr.bf16.mxu0 %v193
  %326 = vmatpush1.bf16.msra.mxu0 %v192
  %327 = vmatprep.subr.bf16.mxu0 %v189
  %328 = vmatpush1.bf16.msra.mxu0 %v188
  %329 = vmatprep.subr.bf16.mxu0 0
  %330 = vmatpush2.bf16.msra.mxu0 0
  %331 = vmatprep.subr.bf16.mxu0 0
  %332 = vmatpush2.bf16.msra.mxu0 0
  %333 = vmatprep.subr.bf16.mxu0 0
  %334 = vmatpush2.bf16.msra.mxu0 0
  %335 = vmatprep.subr.bf16.mxu0 0
  %336 = vmatpush2.bf16.msra.mxu0 0
  %337 = vmatprep.subr.bf16.mxu0 0
  %338 = vmatpush2.bf16.msra.mxu0 0
  %339 = vmatprep.subr.bf16.mxu0 0
  %340 = vmatpush2.bf16.msra.mxu0 0
  %341 = vmatprep.subr.bf16.mxu0 %v225
  %342 = vmatpush2.bf16.msra.mxu0 %v224
  %343 = vmatprep.subr.bf16.mxu0 %v221
  %344 = vmatpush2.bf16.msra.mxu0 %v220
  %345 = vmatprep.mubr.bf16.mxu0 %v268
  %346 = vmatmul.mubr.bf16.gmra.mxu0 %v63
  %v347 = vpop.f32.mrf.mxu0
  %v348 = vadd.f32 0.0, %v347
  %v349 = vpop.f32.mrf.mxu0
  %v350 = vadd.f32 0.0, %v349
  %v351 = vpop.f32.mrf.mxu0
  %v352 = vadd.f32 0.0, %v351
  %v353 = vpop.f32.mrf.mxu0
  %v354 = vadd.f32 0.0, %v353
  %355 = vdwg.mxu0
  %v356 = vmax.f32 %v305, %v307
  %v357 = vmax.f32 %v309, %v311
  %v358 = vmax.f32 %v348, %v350
  %v359 = vmax.f32 %v352, %v354
  %v360 = vmax.f32 %v356, %v358
  %v361 = vmax.f32 %v357, %v359
  %v362 = vld [vmem:[%s2] sm:$0xff]
  %v363 = vld [vmem:[%s2 + $0x8] sm:$0xff]
  %365 = vset.pattern.permute.xlu0 0
  %366 = vperm.xlu0 %365, %v362
  %v367 = vpop.permute.xlu0 %366
  %370 = vset.pattern.permute.xlu0 0
  %371 = vperm.xlu0 %370, %v363
  %v372 = vpop.permute.xlu0 %371
  %v374 = vadd.f32 %v360, %v367
  %v375 = vadd.f32 %v361, %v372
  %v376 = vmax.f32 %v374, 0.0
  %v377 = vmax.f32 %v375, 0.0
  %v378 = vpack.c.bf16 %v377, %v376
  %v380 = vunpack.c.l.b16 %v378
  %v381 = vunpack.c.h.b16 %v378
  %v382 = vpack.c.b16 %v380, %v380
  %v383 = vpack.c.b16 %v381, %v381
  %386 = vst [vmem:[%s3] sm:$0xf] %v382
  %387 = vst [vmem:[%s3 + $0x4] sm:$0xf] %v383
  // Predicated region
  $region14: #{model_forward.4} parent=0 // pred_check
    _
  $region15: #{model_forward.4} parent=0 // pred_check_branch
    %389 = sbr.rel (0) target = $region17
  $region16: #{model_forward.4} parent=0 // pred_region
    _
  $region17: #{model_forward.4} parent=0 // pred_fallthru
    _
  // Predicated region
  $region18: #{model_forward.4} parent=0 // pred_check
    _
  $region19: #{model_forward.4} parent=0 // pred_check_branch
    %391 = sbr.rel (0) target = $region21
  $region20: #{model_forward.4} parent=0 // pred_region
    _
  $region21: #{model_forward.4} parent=0 // pred_fallthru
    _

// kernel: model_forward.5
$region0: #{model_forward.5}
  #allocation0 [shape = 'u32[]', space=smem, size = 0x4, offset = 0x4, fixed_abs, tag = 'smem constant byte address 0x4 - core index']
  #allocation1 [shape = 'u32[144,128]{1,0:T(1,128)}', space=vmem, size = 0x12000, scoped, tag = 'internal scratch']
  %s0 = inlined_call_operand.vmem [shape: bf16[128,400], index: 0, kind: input, shape index: {}]
  %s1 = inlined_call_operand.vmem [shape: bf16[400,128], index: 1, kind: input, shape index: {}]
  %s2 = inlined_call_operand.vmem [shape: f32[1,128], index: 2, kind: input, shape index: {}]
  %s3 = inlined_call_operand.vmem [shape: bf16[128,128], index: 3, kind: input, shape index: {}]
  %s4 = inlined_call_operand.vmem [shape: f32[1,128], index: 4, kind: input, shape index: {}]
  %s5 = inlined_call_operand.vmem [shape: bf16[128,128], index: 5, kind: input, shape index: {}]
  %s6 = inlined_call_operand.vmem [shape: f32[1,128], index: 6, kind: input, shape index: {}]
  %s7 = inlined_call_operand.vmem [shape: f32[128,128], index: 7, kind: output, shape index: {}]
  %s8 = sld [smem:[#allocation0]]
  $region38: #{model_forward.5} parent=0
    _
  %s10 = ssub.s32 1, %s8
  %s11 = scalar_select 0, %s10, %s8
  // Predicated region
  $region2: #{model_forward.5} parent=0 // pred_check
    _
  $region3: #{model_forward.5} parent=0 // pred_check_branch
    %13 = sbr.rel (0) target = $region5
  $region4: #{model_forward.5} parent=0 // pred_region
    _
  $region5: #{model_forward.5} parent=0 // pred_fallthru
    _
  // Predicated region
  $region6: #{model_forward.5} parent=0 // pred_check
    _
  $region7: #{model_forward.5} parent=0 // pred_check_branch
    %15 = sbr.rel (0) target = $region9
  $region8: #{model_forward.5} parent=0 // pred_region
    _
  $region9: #{model_forward.5} parent=0 // pred_fallthru
    _
  // Predicated region
  $region10: #{model_forward.5} parent=0 // pred_check
    _
  $region11: #{model_forward.5} parent=0 // pred_check_branch
    %17 = sbr.rel (0) target = $region13
  $region12: #{model_forward.5} parent=0 // pred_region
    _
  $region13: #{model_forward.5} parent=0 // pred_fallthru
    _
  // Predicated region
  $region14: #{model_forward.5} parent=0 // pred_check
    _
  $region15: #{model_forward.5} parent=0 // pred_check_branch
    %19 = sbr.rel (0) target = $region17
  $region16: #{model_forward.5} parent=0 // pred_region
    _
  $region17: #{model_forward.5} parent=0 // pred_fallthru
    _
  // Predicated region
  $region18: #{model_forward.5} parent=0 // pred_check
    _
  $region19: #{model_forward.5} parent=0 // pred_check_branch
    %21 = sbr.rel (0) target = $region21
  $region20: #{model_forward.5} parent=0 // pred_region
    _
  $region21: #{model_forward.5} parent=0 // pred_fallthru
    _
  // Predicated region
  $region22: #{model_forward.5} parent=0 // pred_check
    _
  $region23: #{model_forward.5} parent=0 // pred_check_branch
    %23 = sbr.rel (0) target = $region25
  $region24: #{model_forward.5} parent=0 // pred_region
    _
  $region25: #{model_forward.5} parent=0 // pred_fallthru
    _
  // Predicated region
  $region26: #{model_forward.5} parent=0 // pred_check
    _
  $region27: #{model_forward.5} parent=0 // pred_check_branch
    %25 = sbr.rel (0) target = $region29
  $region28: #{model_forward.5} parent=0 // pred_region
    _
  $region29: #{model_forward.5} parent=0 // pred_fallthru
    _
  %v27 = vld [vmem:[%s0] sm:$0xff]
  %v28 = vld [vmem:[%s0 + $0x8] sm:$0xff]
  %v29 = vld [vmem:[%s0 + $0x10] sm:$0xff]
  %v30 = vld [vmem:[%s0 + $0x18] sm:$0xff]
  %v31 = vld [vmem:[%s0 + $0x20] sm:$0xff]
  %v32 = vld [vmem:[%s0 + $0x28] sm:$0xff]
  %v33 = vld [vmem:[%s0 + $0x30] sm:$0xff]
  %v34 = vld [vmem:[%s0 + $0x38] sm:$0xff]
  %v35 = vld [vmem:[%s0 + $0x40] sm:$0xff]
  %v36 = vld [vmem:[%s0 + $0x48] sm:$0xff]
  %v37 = vld [vmem:[%s0 + $0x50] sm:$0xff]
  %v38 = vld [vmem:[%s0 + $0x58] sm:$0xff]
  %v39 = vld [vmem:[%s0 + $0x60] sm:$0xff]
  %v40 = vld [vmem:[%s0 + $0x68] sm:$0xff]
  %v41 = vld [vmem:[%s0 + $0x70] sm:$0xff]
  %v42 = vld [vmem:[%s0 + $0x78] sm:$0xff]
  %v43 = vld [vmem:[%s0 + $0x80] sm:$0xff]
  %v44 = vld [vmem:[%s0 + $0x88] sm:$0xff]
  %v45 = vld [vmem:[%s0 + $0x90] sm:$0xff]
  %v46 = vld [vmem:[%s0 + $0x98] sm:$0xff]
  %v47 = vld [vmem:[%s0 + $0xa0] sm:$0xff]
  %v48 = vld [vmem:[%s0 + $0xa8] sm:$0xff]
  %v49 = vld [vmem:[%s0 + $0xb0] sm:$0xff]
  %v50 = vld [vmem:[%s0 + $0xb8] sm:$0xff]
  %v51 = vld [vmem:[%s0 + $0xc0] sm:$0xff]
  %v52 = vld [vmem:[%s0 + $0xc8] sm:$0xff]
  %v53 = vld [vmem:[%s0 + $0xd0] sm:$0xff]
  %v54 = vld [vmem:[%s0 + $0xd8] sm:$0xff]
  %v55 = vld [vmem:[%s0 + $0xe0] sm:$0xff]
  %v56 = vld [vmem:[%s0 + $0xe8] sm:$0xff]
  %v57 = vld [vmem:[%s0 + $0xf0] sm:$0xff]
  %v58 = vld [vmem:[%s0 + $0xf8] sm:$0xff]
  %v59 = vld [vmem:[%s1] sm:$0xf]
  %v60 = vld [vmem:[%s1 + $0x4] sm:$0xf]
  %v61 = vld [vmem:[%s1 + $0x8] sm:$0xf]
  %v62 = vld [vmem:[%s1 + $0xc] sm:$0xf]
  %v63 = vld [vmem:[%s1 + $0x10] sm:$0xf]
  %v64 = vld [vmem:[%s1 + $0x14] sm:$0xf]
  %v65 = vld [vmem:[%s1 + $0x18] sm:$0xf]
  %v66 = vld [vmem:[%s1 + $0x1c] sm:$0xf]
  %v67 = vld [vmem:[%s1 + $0x20] sm:$0xf]
  %v68 = vld [vmem:[%s1 + $0x24] sm:$0xf]
  %v69 = vld [vmem:[%s1 + $0x28] sm:$0xf]
  %v70 = vld [vmem:[%s1 + $0x2c] sm:$0xf]
  %v71 = vld [vmem:[%s1 + $0x30] sm:$0xf]
  %v72 = vld [vmem:[%s1 + $0x34] sm:$0xf]
  %v73 = vld [vmem:[%s1 + $0x38] sm:$0xf]
  %v74 = vld [vmem:[%s1 + $0x3c] sm:$0xf]
  %v75 = vld [vmem:[%s1 + $0x40] sm:$0xf]
  %v76 = vld [vmem:[%s1 + $0x44] sm:$0xf]
  %v77 = vld [vmem:[%s1 + $0x48] sm:$0xf]
  %v78 = vld [vmem:[%s1 + $0x4c] sm:$0xf]
  %v79 = vld [vmem:[%s1 + $0x50] sm:$0xf]
  %v80 = vld [vmem:[%s1 + $0x54] sm:$0xf]
  %v81 = vld [vmem:[%s1 + $0x58] sm:$0xf]
  %v82 = vld [vmem:[%s1 + $0x5c] sm:$0xf]
  %v83 = vld [vmem:[%s1 + $0x60] sm:$0xf]
  %v84 = vld [vmem:[%s1 + $0x64] sm:$0xf]
  %v85 = vld [vmem:[%s1 + $0x68] sm:$0xf]
  %v86 = vld [vmem:[%s1 + $0x6c] sm:$0xf]
  %v87 = vld [vmem:[%s1 + $0x70] sm:$0xf]
  %v88 = vld [vmem:[%s1 + $0x74] sm:$0xf]
  %v89 = vld [vmem:[%s1 + $0x78] sm:$0xf]
  %v90 = vld [vmem:[%s1 + $0x7c] sm:$0xf]
  %v91 = vld [vmem:[%s1 + $0x80] sm:$0xf]
  %v92 = vld [vmem:[%s1 + $0x84] sm:$0xf]
  %v93 = vld [vmem:[%s1 + $0x88] sm:$0xf]
  %v94 = vld [vmem:[%s1 + $0x8c] sm:$0xf]
  %v95 = vld [vmem:[%s1 + $0x90] sm:$0xf]
  %v96 = vld [vmem:[%s1 + $0x94] sm:$0xf]
  %v97 = vld [vmem:[%s1 + $0x98] sm:$0xf]
  %v98 = vld [vmem:[%s1 + $0x9c] sm:$0xf]
  %v99 = vld [vmem:[%s1 + $0xa0] sm:$0xf]
  %v100 = vld [vmem:[%s1 + $0xa4] sm:$0xf]
  %v101 = vld [vmem:[%s1 + $0xa8] sm:$0xf]
  %v102 = vld [vmem:[%s1 + $0xac] sm:$0xf]
  %v103 = vld [vmem:[%s1 + $0xb0] sm:$0xf]
  %v104 = vld [vmem:[%s1 + $0xb4] sm:$0xf]
  %v105 = vld [vmem:[%s1 + $0xb8] sm:$0xf]
  %v106 = vld [vmem:[%s1 + $0xbc] sm:$0xf]
  %v107 = vld [vmem:[%s1 + $0xc0] sm:$0xf]
  %v108 = vld [vmem:[%s1 + $0xc4] sm:$0xf]
  %v109 = vld [vmem:[%s2] sm:$0x1]
  %v111 = vlaneseq
  %v112 = vshrl.u32 %v111, 7
  %v113 = vsub.s32 0, %v112
  %v114 = vrot.slane %v109, %v113
  %v148 = vunpack.c.l.b16 %v27
  %v149 = vunpack.c.h.b16 %v27
  %v150 = vunpack.c.l.b16 %v28
  %v151 = vunpack.c.h.b16 %v28
  %v152 = vunpack.c.l.b16 %v29
  %v153 = vunpack.c.h.b16 %v29
  %v154 = vunpack.c.l.b16 %v30
  %v155 = vunpack.c.h.b16 %v30
  %v156 = vunpack.c.l.b16 %v31
  %v157 = vunpack.c.h.b16 %v31
  %v158 = vunpack.c.l.b16 %v32
  %v159 = vunpack.c.h.b16 %v32
  %v160 = vunpack.c.l.b16 %v33
  %v161 = vunpack.c.h.b16 %v33
  %v162 = vunpack.c.l.b16 %v34
  %v163 = vunpack.c.h.b16 %v34
  %v164 = vunpack.c.l.b16 %v35
  %v165 = vunpack.c.h.b16 %v35
  %v166 = vunpack.c.l.b16 %v36
  %v167 = vunpack.c.h.b16 %v36
  %v168 = vunpack.c.l.b16 %v37
  %v169 = vunpack.c.h.b16 %v37
  %v170 = vunpack.c.l.b16 %v38
  %v171 = vunpack.c.h.b16 %v38
  %v172 = vunpack.c.l.b16 %v39
  %v173 = vunpack.c.h.b16 %v39
  %v174 = vunpack.c.l.b16 %v40
  %v175 = vunpack.c.h.b16 %v40
  %v176 = vunpack.c.l.b16 %v41
  %v177 = vunpack.c.h.b16 %v41
  %v178 = vunpack.c.l.b16 %v42
  %v179 = vunpack.c.h.b16 %v42
  %v180 = vunpack.c.l.b16 %v43
  %v181 = vunpack.c.h.b16 %v43
  %v182 = vunpack.c.l.b16 %v44
  %v183 = vunpack.c.h.b16 %v44
  %v184 = vunpack.c.l.b16 %v45
  %v185 = vunpack.c.h.b16 %v45
  %v186 = vunpack.c.l.b16 %v46
  %v187 = vunpack.c.h.b16 %v46
  %v188 = vunpack.c.l.b16 %v47
  %v189 = vunpack.c.h.b16 %v47
  %v190 = vunpack.c.l.b16 %v48
  %v191 = vunpack.c.h.b16 %v48
  %v192 = vunpack.c.l.b16 %v49
  %v193 = vunpack.c.h.b16 %v49
  %v194 = vunpack.c.l.b16 %v50
  %v195 = vunpack.c.h.b16 %v50
  %v196 = vunpack.c.l.b16 %v51
  %v197 = vunpack.c.h.b16 %v51
  %v198 = vunpack.c.l.b16 %v52
  %v199 = vunpack.c.h.b16 %v52
  %v200 = vunpack.c.l.b16 %v53
  %v201 = vunpack.c.h.b16 %v53
  %v202 = vunpack.c.l.b16 %v54
  %v203 = vunpack.c.h.b16 %v54
  %v204 = vunpack.c.l.b16 %v55
  %v205 = vunpack.c.h.b16 %v55
  %v206 = vunpack.c.l.b16 %v56
  %v207 = vunpack.c.h.b16 %v56
  %v208 = vunpack.c.l.b16 %v57
  %v209 = vunpack.c.h.b16 %v57
  %v210 = vunpack.c.l.b16 %v58
  %v211 = vunpack.c.h.b16 %v58
  %v212 = vpack.c.b16 %v152, %v148
  %v213 = vpack.c.b16 %v153, %v149
  %v214 = vpack.c.b16 %v154, %v150
  %v215 = vpack.c.b16 %v155, %v151
  %v216 = vpack.c.b16 %v160, %v156
  %v217 = vpack.c.b16 %v161, %v157
  %v218 = vpack.c.b16 %v162, %v158
  %v219 = vpack.c.b16 %v163, %v159
  %v220 = vpack.c.b16 %v168, %v164
  %v221 = vpack.c.b16 %v169, %v165
  %v222 = vpack.c.b16 %v170, %v166
  %v223 = vpack.c.b16 %v171, %v167
  %v224 = vpack.c.b16 %v176, %v172
  %v225 = vpack.c.b16 %v177, %v173
  %v226 = vpack.c.b16 %v178, %v174
  %v227 = vpack.c.b16 %v179, %v175
  %v228 = vpack.c.b16 %v184, %v180
  %v229 = vpack.c.b16 %v185, %v181
  %v230 = vpack.c.b16 %v186, %v182
  %v231 = vpack.c.b16 %v187, %v183
  %v232 = vpack.c.b16 %v192, %v188
  %v233 = vpack.c.b16 %v193, %v189
  %v234 = vpack.c.b16 %v194, %v190
  %v235 = vpack.c.b16 %v195, %v191
  %v236 = vpack.c.b16 %v200, %v196
  %v237 = vpack.c.b16 %v201, %v197
  %v238 = vpack.c.b16 %v202, %v198
  %v239 = vpack.c.b16 %v203, %v199
  %v240 = vpack.c.b16 %v208, %v204
  %v241 = vpack.c.b16 %v209, %v205
  %v242 = vpack.c.b16 %v210, %v206
  %v243 = vpack.c.b16 %v211, %v207
  %v318 = vunpack.c.l.b16 %v59
  %v319 = vunpack.c.l.b16 %v60
  %v320 = vunpack.c.l.b16 %v61
  %v321 = vunpack.c.l.b16 %v62
  %v322 = vunpack.c.l.b16 %v63
  %v323 = vunpack.c.l.b16 %v64
  %v324 = vunpack.c.l.b16 %v65
  %v325 = vunpack.c.l.b16 %v66
  %v326 = vunpack.c.l.b16 %v67
  %v327 = vunpack.c.l.b16 %v68
  %v328 = vunpack.c.l.b16 %v69
  %v329 = vunpack.c.l.b16 %v70
  %v330 = vunpack.c.l.b16 %v71
  %v331 = vunpack.c.l.b16 %v72
  %v332 = vunpack.c.l.b16 %v73
  %v333 = vunpack.c.l.b16 %v74
  %v334 = vunpack.c.l.b16 %v75
  %v335 = vunpack.c.l.b16 %v76
  %v336 = vunpack.c.l.b16 %v77
  %v337 = vunpack.c.l.b16 %v78
  %v338 = vunpack.c.l.b16 %v79
  %v339 = vunpack.c.l.b16 %v80
  %v340 = vunpack.c.l.b16 %v81
  %v341 = vunpack.c.l.b16 %v82
  %v342 = vunpack.c.l.b16 %v83
  %v343 = vunpack.c.l.b16 %v84
  %v344 = vunpack.c.l.b16 %v85
  %v345 = vunpack.c.l.b16 %v86
  %v346 = vunpack.c.l.b16 %v87
  %v347 = vunpack.c.l.b16 %v88
  %v348 = vunpack.c.l.b16 %v89
  %v349 = vunpack.c.l.b16 %v90
  %v350 = vunpack.c.l.b16 %v91
  %v351 = vunpack.c.l.b16 %v92
  %v352 = vunpack.c.l.b16 %v93
  %v353 = vunpack.c.l.b16 %v94
  %v354 = vunpack.c.l.b16 %v95
  %v355 = vunpack.c.l.b16 %v96
  %v356 = vunpack.c.l.b16 %v97
  %v357 = vunpack.c.l.b16 %v98
  %v358 = vunpack.c.l.b16 %v99
  %v359 = vunpack.c.l.b16 %v100
  %v360 = vunpack.c.l.b16 %v101
  %v361 = vunpack.c.l.b16 %v102
  %v362 = vunpack.c.l.b16 %v103
  %v363 = vunpack.c.l.b16 %v104
  %v364 = vunpack.c.l.b16 %v105
  %v365 = vunpack.c.l.b16 %v106
  %v366 = vunpack.c.l.b16 %v107
  %v367 = vunpack.c.l.b16 %v108
  %v368 = vpack.c.b16 %v319, %v318
  %v369 = vpack.c.b16 %v321, %v320
  %v370 = vpack.c.b16 %v323, %v322
  %v371 = vpack.c.b16 %v325, %v324
  %v372 = vpack.c.b16 %v327, %v326
  %v373 = vpack.c.b16 %v329, %v328
  %v374 = vpack.c.b16 %v331, %v330
  %v375 = vpack.c.b16 %v333, %v332
  %v376 = vpack.c.b16 %v335, %v334
  %v377 = vpack.c.b16 %v337, %v336
  %v378 = vpack.c.b16 %v339, %v338
  %v379 = vpack.c.b16 %v341, %v340
  %v380 = vpack.c.b16 %v343, %v342
  %v381 = vpack.c.b16 %v345, %v344
  %v382 = vpack.c.b16 %v347, %v346
  %v383 = vpack.c.b16 %v349, %v348
  %v384 = vpack.c.b16 %v351, %v350
  %v385 = vpack.c.b16 %v353, %v352
  %v386 = vpack.c.b16 %v355, %v354
  %v387 = vpack.c.b16 %v357, %v356
  %v388 = vpack.c.b16 %v359, %v358
  %v389 = vpack.c.b16 %v361, %v360
  %v390 = vpack.c.b16 %v363, %v362
  %v391 = vpack.c.b16 %v365, %v364
  %v392 = vpack.c.b16 %v367, %v366
  %vm418 = vcmask 130048
  %v420 = vsel %vm418, %v215, 0
  %v423 = vsel %vm418, %v219, 0
  %v426 = vsel %vm418, %v223, 0
  %v429 = vsel %vm418, %v227, 0
  %v432 = vsel %vm418, %v231, 0
  %v435 = vsel %vm418, %v235, 0
  %v438 = vsel %vm418, %v239, 0
  %v441 = vsel %vm418, %v243, 0
  %443 = vmatprep.subr.bf16.mxu0 0
  %444 = vmatpush1.bf16.msra.mxu0 %v375
  %445 = vmatprep.subr.bf16.mxu0 0
  %446 = vmatpush1.bf16.msra.mxu0 %v374
  %447 = vmatprep.subr.bf16.mxu0 0
  %448 = vmatpush1.bf16.msra.mxu0 %v373
  %449 = vmatprep.subr.bf16.mxu0 0
  %450 = vmatpush1.bf16.msra.mxu0 %v372
  %451 = vmatprep.subr.bf16.mxu0 0
  %452 = vmatpush1.bf16.msra.mxu0 %v371
  %453 = vmatprep.subr.bf16.mxu0 0
  %454 = vmatpush1.bf16.msra.mxu0 %v370
  %455 = vmatprep.subr.bf16.mxu0 0
  %456 = vmatpush1.bf16.msra.mxu0 %v369
  %457 = vmatprep.subr.bf16.mxu0 0
  %458 = vmatpush1.bf16.msra.mxu0 %v368
  %459 = vmatprep.subr.bf16.mxu0 0
  %460 = vmatpush2.bf16.msra.mxu0 %v383
  %461 = vmatprep.subr.bf16.mxu0 0
  %462 = vmatpush2.bf16.msra.mxu0 %v382
  %463 = vmatprep.subr.bf16.mxu0 0
  %464 = vmatpush2.bf16.msra.mxu0 %v381
  %465 = vmatprep.subr.bf16.mxu0 0
  %466 = vmatpush2.bf16.msra.mxu0 %v380
  %467 = vmatprep.subr.bf16.mxu0 0
  %468 = vmatpush2.bf16.msra.mxu0 %v379
  %469 = vmatprep.subr.bf16.mxu0 0
  %470 = vmatpush2.bf16.msra.mxu0 %v378
  %471 = vmatprep.subr.bf16.mxu0 0
  %472 = vmatpush2.bf16.msra.mxu0 %v377
  %473 = vmatprep.subr.bf16.mxu0 0
  %474 = vmatpush2.bf16.msra.mxu0 %v376
  %475 = vmatprep.mubr.bf16.mxu0 %v213
  %476 = vmatmul.mubr.bf16.gmra.mxu0 %v212
  %v477 = vpop.f32.mrf.mxu0
  %v478 = vadd.f32 %v114, %v477
  %v479 = vpop.f32.mrf.mxu0
  %v480 = vpop.f32.mrf.mxu0
  %v481 = vadd.f32 %v114, %v480
  %v482 = vpop.f32.mrf.mxu0
  %483 = vmatprep.mubr.bf16.mxu0 %v217
  %484 = vmatmul.mubr.bf16.gmra.mxu0 %v216
  %v485 = vpop.f32.mrf.mxu0
  %v486 = vadd.f32 %v114, %v485
  %v487 = vpop.f32.mrf.mxu0
  %v488 = vpop.f32.mrf.mxu0
  %v489 = vadd.f32 %v114, %v488
  %v490 = vpop.f32.mrf.mxu0
  %491 = vmatprep.mubr.bf16.mxu0 %v221
  %492 = vmatmul.mubr.bf16.gmra.mxu0 %v220
  %v493 = vpop.f32.mrf.mxu0
  %v494 = vadd.f32 %v114, %v493
  %v495 = vpop.f32.mrf.mxu0
  %v496 = vpop.f32.mrf.mxu0
  %v497 = vadd.f32 %v114, %v496
  %v498 = vpop.f32.mrf.mxu0
  %499 = vmatprep.mubr.bf16.mxu0 %v225
  %500 = vmatmul.mubr.bf16.gmra.mxu0 %v224
  %v501 = vpop.f32.mrf.mxu0
  %v502 = vadd.f32 %v114, %v501
  %v503 = vpop.f32.mrf.mxu0
  %v504 = vpop.f32.mrf.mxu0
  %v505 = vadd.f32 %v114, %v504
  %v506 = vpop.f32.mrf.mxu0
  %507 = vmatprep.mubr.bf16.mxu0 %v229
  %508 = vmatmul.mubr.bf16.gmra.mxu0 %v228
  %v509 = vpop.f32.mrf.mxu0
  %v510 = vadd.f32 %v114, %v509
  %v511 = vpop.f32.mrf.mxu0
  %v512 = vpop.f32.mrf.mxu0
  %v513 = vadd.f32 %v114, %v512
  %v514 = vpop.f32.mrf.mxu0
  %515 = vmatprep.mubr.bf16.mxu0 %v233
  %516 = vmatmul.mubr.bf16.gmra.mxu0 %v232
  %v517 = vpop.f32.mrf.mxu0
  %v518 = vadd.f32 %v114, %v517
  %v519 = vpop.f32.mrf.mxu0
  %v520 = vpop.f32.mrf.mxu0
  %v521 = vadd.f32 %v114, %v520
  %v522 = vpop.f32.mrf.mxu0
  %523 = vmatprep.mubr.bf16.mxu0 %v237
  %524 = vmatmul.mubr.bf16.gmra.mxu0 %v236
  %v525 = vpop.f32.mrf.mxu0
  %v526 = vadd.f32 %v114, %v525
  %v527 = vpop.f32.mrf.mxu0
  %v528 = vpop.f32.mrf.mxu0
  %v529 = vadd.f32 %v114, %v528
  %v530 = vpop.f32.mrf.mxu0
  %531 = vmatprep.mubr.bf16.mxu0 %v241
  %532 = vmatmul.mubr.bf16.gmra.mxu0 %v240
  %v533 = vpop.f32.mrf.mxu0
  %v534 = vadd.f32 %v114, %v533
  %v535 = vpop.f32.mrf.mxu0
  %v536 = vpop.f32.mrf.mxu0
  %v537 = vadd.f32 %v114, %v536
  %v538 = vpop.f32.mrf.mxu0
  %539 = vdwg.mxu0
  %540 = vmatprep.subr.bf16.mxu0 0
  %541 = vmatpush1.bf16.msra.mxu0 %v391
  %542 = vmatprep.subr.bf16.mxu0 0
  %543 = vmatpush1.bf16.msra.mxu0 %v390
  %544 = vmatprep.subr.bf16.mxu0 0
  %545 = vmatpush1.bf16.msra.mxu0 %v389
  %546 = vmatprep.subr.bf16.mxu0 0
  %547 = vmatpush1.bf16.msra.mxu0 %v388
  %548 = vmatprep.subr.bf16.mxu0 0
  %549 = vmatpush1.bf16.msra.mxu0 %v387
  %550 = vmatprep.subr.bf16.mxu0 0
  %551 = vmatpush1.bf16.msra.mxu0 %v386
  %552 = vmatprep.subr.bf16.mxu0 0
  %553 = vmatpush1.bf16.msra.mxu0 %v385
  %554 = vmatprep.subr.bf16.mxu0 0
  %555 = vmatpush1.bf16.msra.mxu0 %v384
  %556 = vmatprep.subr.bf16.mxu0 0
  %557 = vmatpush2.bf16.msra.mxu0 0
  %558 = vmatprep.subr.bf16.mxu0 0
  %559 = vmatpush2.bf16.msra.mxu0 0
  %560 = vmatprep.subr.bf16.mxu0 0
  %561 = vmatpush2.bf16.msra.mxu0 0
  %562 = vmatprep.subr.bf16.mxu0 0
  %563 = vmatpush2.bf16.msra.mxu0 0
  %564 = vmatprep.subr.bf16.mxu0 0
  %565 = vmatpush2.bf16.msra.mxu0 0
  %566 = vmatprep.subr.bf16.mxu0 0
  %567 = vmatpush2.bf16.msra.mxu0 0
  %568 = vmatprep.subr.bf16.mxu0 0
  %569 = vmatpush2.bf16.msra.mxu0 0
  %570 = vmatprep.subr.bf16.mxu0 0
  %571 = vmatpush2.bf16.msra.mxu0 %v392
  %572 = vmatprep.mubr.bf16.mxu0 %v420
  %573 = vmatmul.mubr.bf16.gmra.mxu0 %v214
  %v574 = vpop.f32.mrf.mxu0
  %v575 = vadd.f32 %v478, %v574
  %v576 = vpop.f32.mrf.mxu0
  %v577 = vpop.f32.mrf.mxu0
  %v578 = vadd.f32 %v481, %v577
  %v579 = vpop.f32.mrf.mxu0
  %580 = vmatprep.mubr.bf16.mxu0 %v423
  %581 = vmatmul.mubr.bf16.gmra.mxu0 %v218
  %v582 = vpop.f32.mrf.mxu0
  %v583 = vadd.f32 %v486, %v582
  %v584 = vpop.f32.mrf.mxu0
  %v585 = vpop.f32.mrf.mxu0
  %v586 = vadd.f32 %v489, %v585
  %v587 = vpop.f32.mrf.mxu0
  %588 = vmatprep.mubr.bf16.mxu0 %v426
  %589 = vmatmul.mubr.bf16.gmra.mxu0 %v222
  %v590 = vpop.f32.mrf.mxu0
  %v591 = vadd.f32 %v494, %v590
  %v592 = vpop.f32.mrf.mxu0
  %v593 = vpop.f32.mrf.mxu0
  %v594 = vadd.f32 %v497, %v593
  %v595 = vpop.f32.mrf.mxu0
  %596 = vmatprep.mubr.bf16.mxu0 %v429
  %597 = vmatmul.mubr.bf16.gmra.mxu0 %v226
  %v598 = vpop.f32.mrf.mxu0
  %v599 = vadd.f32 %v502, %v598
  %v600 = vpop.f32.mrf.mxu0
  %v601 = vpop.f32.mrf.mxu0
  %v602 = vadd.f32 %v505, %v601
  %v603 = vpop.f32.mrf.mxu0
  %604 = vmatprep.mubr.bf16.mxu0 %v432
  %605 = vmatmul.mubr.bf16.gmra.mxu0 %v230
  %v606 = vpop.f32.mrf.mxu0
  %v607 = vadd.f32 %v510, %v606
  %v608 = vpop.f32.mrf.mxu0
  %v609 = vpop.f32.mrf.mxu0
  %v610 = vadd.f32 %v513, %v609
  %v611 = vpop.f32.mrf.mxu0
  %612 = vmatprep.mubr.bf16.mxu0 %v435
  %613 = vmatmul.mubr.bf16.gmra.mxu0 %v234
  %v614 = vpop.f32.mrf.mxu0
  %v615 = vadd.f32 %v518, %v614
  %v616 = vpop.f32.mrf.mxu0
  %v617 = vpop.f32.mrf.mxu0
  %v618 = vadd.f32 %v521, %v617
  %v619 = vpop.f32.mrf.mxu0
  %620 = vmatprep.mubr.bf16.mxu0 %v438
  %621 = vmatmul.mubr.bf16.gmra.mxu0 %v238
  %v622 = vpop.f32.mrf.mxu0
  %v623 = vadd.f32 %v526, %v622
  %v624 = vpop.f32.mrf.mxu0
  %v625 = vpop.f32.mrf.mxu0
  %v626 = vadd.f32 %v529, %v625
  %v627 = vpop.f32.mrf.mxu0
  %628 = vmatprep.mubr.bf16.mxu0 %v441
  %629 = vmatmul.mubr.bf16.gmra.mxu0 %v242
  %v630 = vpop.f32.mrf.mxu0
  %v631 = vadd.f32 %v534, %v630
  %v632 = vpop.f32.mrf.mxu0
  %v633 = vpop.f32.mrf.mxu0
  %v634 = vadd.f32 %v537, %v633
  %v635 = vpop.f32.mrf.mxu0
  %636 = vdwg.mxu0
  %v637 = vmax.f32 %v575, 0.0
  %v638 = vmax.f32 %v578, 0.0
  %v639 = vmax.f32 %v583, 0.0
  %v640 = vmax.f32 %v586, 0.0
  %v641 = vmax.f32 %v591, 0.0
  %v642 = vmax.f32 %v594, 0.0
  %v643 = vmax.f32 %v599, 0.0
  %v644 = vmax.f32 %v602, 0.0
  %v645 = vmax.f32 %v607, 0.0
  %v646 = vmax.f32 %v610, 0.0
  %v647 = vmax.f32 %v615, 0.0
  %v648 = vmax.f32 %v618, 0.0
  %v649 = vmax.f32 %v623, 0.0
  %v650 = vmax.f32 %v626, 0.0
  %v651 = vmax.f32 %v631, 0.0
  %v652 = vmax.f32 %v634, 0.0
  %v653 = vpack.c.bf16 %v638, %v637
  %v654 = vpack.c.bf16 %v640, %v639
  %v655 = vpack.c.bf16 %v642, %v641
  %v656 = vpack.c.bf16 %v644, %v643
  %v657 = vpack.c.bf16 %v646, %v645
  %v658 = vpack.c.bf16 %v648, %v647
  %v659 = vpack.c.bf16 %v650, %v649
  %v660 = vpack.c.bf16 %v652, %v651
  %v661 = vld [vmem:[%s3] sm:$0xf]
  %v662 = vld [vmem:[%s3 + $0x4] sm:$0xf]
  %v663 = vld [vmem:[%s3 + $0x8] sm:$0xf]
  %v664 = vld [vmem:[%s3 + $0xc] sm:$0xf]
  %v665 = vld [vmem:[%s3 + $0x10] sm:$0xf]
  %v666 = vld [vmem:[%s3 + $0x14] sm:$0xf]
  %v667 = vld [vmem:[%s3 + $0x18] sm:$0xf]
  %v668 = vld [vmem:[%s3 + $0x1c] sm:$0xf]
  %v669 = vld [vmem:[%s3 + $0x20] sm:$0xf]
  %v670 = vld [vmem:[%s3 + $0x24] sm:$0xf]
  %v671 = vld [vmem:[%s3 + $0x28] sm:$0xf]
  %v672 = vld [vmem:[%s3 + $0x2c] sm:$0xf]
  %v673 = vld [vmem:[%s3 + $0x30] sm:$0xf]
  %v674 = vld [vmem:[%s3 + $0x34] sm:$0xf]
  %v675 = vld [vmem:[%s3 + $0x38] sm:$0xf]
  %v676 = vld [vmem:[%s3 + $0x3c] sm:$0xf]
  %v677 = vld [vmem:[%s4] sm:$0x1]
  %v679 = vlaneseq
  %v680 = vshrl.u32 %v679, 7
  %v681 = vsub.s32 0, %v680
  %v682 = vrot.slane %v677, %v681
  %v700 = vunpack.c.l.b16 %v661
  %v701 = vunpack.c.l.b16 %v662
  %v702 = vunpack.c.l.b16 %v663
  %v703 = vunpack.c.l.b16 %v664
  %v704 = vunpack.c.l.b16 %v665
  %v705 = vunpack.c.l.b16 %v666
  %v706 = vunpack.c.l.b16 %v667
  %v707 = vunpack.c.l.b16 %v668
  %v708 = vunpack.c.l.b16 %v669
  %v709 = vunpack.c.l.b16 %v670
  %v710 = vunpack.c.l.b16 %v671
  %v711 = vunpack.c.l.b16 %v672
  %v712 = vunpack.c.l.b16 %v673
  %v713 = vunpack.c.l.b16 %v674
  %v714 = vunpack.c.l.b16 %v675
  %v715 = vunpack.c.l.b16 %v676
  %v716 = vpack.c.b16 %v701, %v700
  %v717 = vpack.c.b16 %v703, %v702
  %v718 = vpack.c.b16 %v705, %v704
  %v719 = vpack.c.b16 %v707, %v706
  %v720 = vpack.c.b16 %v709, %v708
  %v721 = vpack.c.b16 %v711, %v710
  %v722 = vpack.c.b16 %v713, %v712
  %v723 = vpack.c.b16 %v715, %v714
  %732 = vmatprep.subr.bf16.mxu0 0
  %733 = vmatpush1.bf16.msra.mxu0 %v723
  %734 = vmatprep.subr.bf16.mxu0 0
  %735 = vmatpush1.bf16.msra.mxu0 %v722
  %736 = vmatprep.subr.bf16.mxu0 0
  %737 = vmatpush1.bf16.msra.mxu0 %v721
  %738 = vmatprep.subr.bf16.mxu0 0
  %739 = vmatpush1.bf16.msra.mxu0 %v720
  %740 = vmatprep.subr.bf16.mxu0 0
  %741 = vmatpush1.bf16.msra.mxu0 %v719
  %742 = vmatprep.subr.bf16.mxu0 0
  %743 = vmatpush1.bf16.msra.mxu0 %v718
  %744 = vmatprep.subr.bf16.mxu0 0
  %745 = vmatpush1.bf16.msra.mxu0 %v717
  %746 = vmatprep.subr.bf16.mxu0 0
  %747 = vmatpush1.bf16.msra.mxu0 %v716
  %748 = vmatprep.subr.bf16.mxu0 0
  %749 = vmatpush2.bf16.msra.mxu0 0
  %750 = vmatprep.subr.bf16.mxu0 0
  %751 = vmatpush2.bf16.msra.mxu0 0
  %752 = vmatprep.subr.bf16.mxu0 0
  %753 = vmatpush2.bf16.msra.mxu0 0
  %754 = vmatprep.subr.bf16.mxu0 0
  %755 = vmatpush2.bf16.msra.mxu0 0
  %756 = vmatprep.subr.bf16.mxu0 0
  %757 = vmatpush2.bf16.msra.mxu0 0
  %758 = vmatprep.subr.bf16.mxu0 0
  %759 = vmatpush2.bf16.msra.mxu0 0
  %760 = vmatprep.subr.bf16.mxu0 0
  %761 = vmatpush2.bf16.msra.mxu0 0
  %762 = vmatprep.subr.bf16.mxu0 0
  %763 = vmatpush2.bf16.msra.mxu0 0
  %764 = vmatprep.mubr.bf16.mxu0 0
  %765 = vmatmul.mubr.bf16.gmra.mxu0 %v653
  %v766 = vpop.f32.mrf.mxu0
  %v767 = vadd.f32 %v682, %v766
  %v768 = vpop.f32.mrf.mxu0
  %v769 = vpop.f32.mrf.mxu0
  %v770 = vadd.f32 %v682, %v769
  %v771 = vpop.f32.mrf.mxu0
  %772 = vmatprep.mubr.bf16.mxu0 0
  %773 = vmatmul.mubr.bf16.gmra.mxu0 %v654
  %v774 = vpop.f32.mrf.mxu0
  %v775 = vadd.f32 %v682, %v774
  %v776 = vpop.f32.mrf.mxu0
  %v777 = vpop.f32.mrf.mxu0
  %v778 = vadd.f32 %v682, %v777
  %v779 = vpop.f32.mrf.mxu0
  %780 = vmatprep.mubr.bf16.mxu0 0
  %781 = vmatmul.mubr.bf16.gmra.mxu0 %v655
  %v782 = vpop.f32.mrf.mxu0
  %v783 = vadd.f32 %v682, %v782
  %v784 = vpop.f32.mrf.mxu0
  %v785 = vpop.f32.mrf.mxu0
  %v786 = vadd.f32 %v682, %v785
  %v787 = vpop.f32.mrf.mxu0
  %788 = vmatprep.mubr.bf16.mxu0 0
  %789 = vmatmul.mubr.bf16.gmra.mxu0 %v656
  %v790 = vpop.f32.mrf.mxu0
  %v791 = vadd.f32 %v682, %v790
  %v792 = vpop.f32.mrf.mxu0
  %v793 = vpop.f32.mrf.mxu0
  %v794 = vadd.f32 %v682, %v793
  %v795 = vpop.f32.mrf.mxu0
  %796 = vmatprep.mubr.bf16.mxu0 0
  %797 = vmatmul.mubr.bf16.gmra.mxu0 %v657
  %v798 = vpop.f32.mrf.mxu0
  %v799 = vadd.f32 %v682, %v798
  %v800 = vpop.f32.mrf.mxu0
  %v801 = vpop.f32.mrf.mxu0
  %v802 = vadd.f32 %v682, %v801
  %v803 = vpop.f32.mrf.mxu0
  %804 = vmatprep.mubr.bf16.mxu0 0
  %805 = vmatmul.mubr.bf16.gmra.mxu0 %v658
  %v806 = vpop.f32.mrf.mxu0
  %v807 = vadd.f32 %v682, %v806
  %v808 = vpop.f32.mrf.mxu0
  %v809 = vpop.f32.mrf.mxu0
  %v810 = vadd.f32 %v682, %v809
  %v811 = vpop.f32.mrf.mxu0
  %812 = vmatprep.mubr.bf16.mxu0 0
  %813 = vmatmul.mubr.bf16.gmra.mxu0 %v659
  %v814 = vpop.f32.mrf.mxu0
  %v815 = vadd.f32 %v682, %v814
  %v816 = vpop.f32.mrf.mxu0
  %v817 = vpop.f32.mrf.mxu0
  %v818 = vadd.f32 %v682, %v817
  %v819 = vpop.f32.mrf.mxu0
  %820 = vmatprep.mubr.bf16.mxu0 0
  %821 = vmatmul.mubr.bf16.gmra.mxu0 %v660
  %v822 = vpop.f32.mrf.mxu0
  %v823 = vadd.f32 %v682, %v822
  %v824 = vpop.f32.mrf.mxu0
  %v825 = vpop.f32.mrf.mxu0
  %v826 = vadd.f32 %v682, %v825
  %v827 = vpop.f32.mrf.mxu0
  %828 = vdwg.mxu0
  %v829 = vmax.f32 %v767, 0.0
  %v830 = vmax.f32 %v770, 0.0
  %v831 = vmax.f32 %v775, 0.0
  %v832 = vmax.f32 %v778, 0.0
  %v833 = vmax.f32 %v783, 0.0
  %v834 = vmax.f32 %v786, 0.0
  %v835 = vmax.f32 %v791, 0.0
  %v836 = vmax.f32 %v794, 0.0
  %v837 = vmax.f32 %v799, 0.0
  %v838 = vmax.f32 %v802, 0.0
  %v839 = vmax.f32 %v807, 0.0
  %v840 = vmax.f32 %v810, 0.0
  %v841 = vmax.f32 %v815, 0.0
  %v842 = vmax.f32 %v818, 0.0
  %v843 = vmax.f32 %v823, 0.0
  %v844 = vmax.f32 %v826, 0.0
  %v845 = vpack.c.bf16 %v830, %v829
  %v846 = vpack.c.bf16 %v832, %v831
  %v847 = vpack.c.bf16 %v834, %v833
  %v848 = vpack.c.bf16 %v836, %v835
  %v849 = vpack.c.bf16 %v838, %v837
  %v850 = vpack.c.bf16 %v840, %v839
  %v851 = vpack.c.bf16 %v842, %v841
  %v852 = vpack.c.bf16 %v844, %v843
  %v853 = vld [vmem:[%s5] sm:$0xf]
  %v854 = vld [vmem:[%s5 + $0x4] sm:$0xf]
  %v855 = vld [vmem:[%s5 + $0x8] sm:$0xf]
  %v856 = vld [vmem:[%s5 + $0xc] sm:$0xf]
  %v857 = vld [vmem:[%s5 + $0x10] sm:$0xf]
  %v858 = vld [vmem:[%s5 + $0x14] sm:$0xf]
  %v859 = vld [vmem:[%s5 + $0x18] sm:$0xf]
  %v860 = vld [vmem:[%s5 + $0x1c] sm:$0xf]
  %v861 = vld [vmem:[%s5 + $0x20] sm:$0xf]
  %v862 = vld [vmem:[%s5 + $0x24] sm:$0xf]
  %v863 = vld [vmem:[%s5 + $0x28] sm:$0xf]
  %v864 = vld [vmem:[%s5 + $0x2c] sm:$0xf]
  %v865 = vld [vmem:[%s5 + $0x30] sm:$0xf]
  %v866 = vld [vmem:[%s5 + $0x34] sm:$0xf]
  %v867 = vld [vmem:[%s5 + $0x38] sm:$0xf]
  %v868 = vld [vmem:[%s5 + $0x3c] sm:$0xf]
  %v869 = vld [vmem:[%s6] sm:$0x1]
  %v871 = vlaneseq
  %v872 = vshrl.u32 %v871, 7
  %v873 = vsub.s32 0, %v872
  %v874 = vrot.slane %v869, %v873
  %v892 = vunpack.c.l.b16 %v853
  %v893 = vunpack.c.l.b16 %v854
  %v894 = vunpack.c.l.b16 %v855
  %v895 = vunpack.c.l.b16 %v856
  %v896 = vunpack.c.l.b16 %v857
  %v897 = vunpack.c.l.b16 %v858
  %v898 = vunpack.c.l.b16 %v859
  %v899 = vunpack.c.l.b16 %v860
  %v900 = vunpack.c.l.b16 %v861
  %v901 = vunpack.c.l.b16 %v862
  %v902 = vunpack.c.l.b16 %v863
  %v903 = vunpack.c.l.b16 %v864
  %v904 = vunpack.c.l.b16 %v865
  %v905 = vunpack.c.l.b16 %v866
  %v906 = vunpack.c.l.b16 %v867
  %v907 = vunpack.c.l.b16 %v868
  %v908 = vpack.c.b16 %v893, %v892
  %v909 = vpack.c.b16 %v895, %v894
  %v910 = vpack.c.b16 %v897, %v896
  %v911 = vpack.c.b16 %v899, %v898
  %v912 = vpack.c.b16 %v901, %v900
  %v913 = vpack.c.b16 %v903, %v902
  %v914 = vpack.c.b16 %v905, %v904
  %v915 = vpack.c.b16 %v907, %v906
  %924 = vmatprep.subr.bf16.mxu0 0
  %925 = vmatpush1.bf16.msra.mxu0 %v915
  %926 = vmatprep.subr.bf16.mxu0 0
  %927 = vmatpush1.bf16.msra.mxu0 %v914
  %928 = vmatprep.subr.bf16.mxu0 0
  %929 = vmatpush1.bf16.msra.mxu0 %v913
  %930 = vmatprep.subr.bf16.mxu0 0
  %931 = vmatpush1.bf16.msra.mxu0 %v912
  %932 = vmatprep.subr.bf16.mxu0 0
  %933 = vmatpush1.bf16.msra.mxu0 %v911
  %934 = vmatprep.subr.bf16.mxu0 0
  %935 = vmatpush1.bf16.msra.mxu0 %v910
  %936 = vmatprep.subr.bf16.mxu0 0
  %937 = vmatpush1.bf16.msra.mxu0 %v909
  %938 = vmatprep.subr.bf16.mxu0 0
  %939 = vmatpush1.bf16.msra.mxu0 %v908
  %940 = vmatprep.subr.bf16.mxu0 0
  %941 = vmatpush2.bf16.msra.mxu0 0
  %942 = vmatprep.subr.bf16.mxu0 0
  %943 = vmatpush2.bf16.msra.mxu0 0
  %944 = vmatprep.subr.bf16.mxu0 0
  %945 = vmatpush2.bf16.msra.mxu0 0
  %946 = vmatprep.subr.bf16.mxu0 0
  %947 = vmatpush2.bf16.msra.mxu0 0
  %948 = vmatprep.subr.bf16.mxu0 0
  %949 = vmatpush2.bf16.msra.mxu0 0
  %950 = vmatprep.subr.bf16.mxu0 0
  %951 = vmatpush2.bf16.msra.mxu0 0
  %952 = vmatprep.subr.bf16.mxu0 0
  %953 = vmatpush2.bf16.msra.mxu0 0
  %954 = vmatprep.subr.bf16.mxu0 0
  %955 = vmatpush2.bf16.msra.mxu0 0
  %956 = vmatprep.mubr.bf16.mxu0 0
  %957 = vmatmul.mubr.bf16.gmra.mxu0 %v845
  %v958 = vpop.f32.mrf.mxu0
  %v959 = vadd.f32 %v874, %v958
  %v960 = vpop.f32.mrf.mxu0
  %v961 = vpop.f32.mrf.mxu0
  %v962 = vadd.f32 %v874, %v961
  %v963 = vpop.f32.mrf.mxu0
  %964 = vmatprep.mubr.bf16.mxu0 0
  %965 = vmatmul.mubr.bf16.gmra.mxu0 %v846
  %v966 = vpop.f32.mrf.mxu0
  %v967 = vadd.f32 %v874, %v966
  %v968 = vpop.f32.mrf.mxu0
  %v969 = vpop.f32.mrf.mxu0
  %v970 = vadd.f32 %v874, %v969
  %v971 = vpop.f32.mrf.mxu0
  %972 = vmatprep.mubr.bf16.mxu0 0
  %973 = vmatmul.mubr.bf16.gmra.mxu0 %v847
  %v974 = vpop.f32.mrf.mxu0
  %v975 = vadd.f32 %v874, %v974
  %v976 = vpop.f32.mrf.mxu0
  %v977 = vpop.f32.mrf.mxu0
  %v978 = vadd.f32 %v874, %v977
  %v979 = vpop.f32.mrf.mxu0
  %980 = vmatprep.mubr.bf16.mxu0 0
  %981 = vmatmul.mubr.bf16.gmra.mxu0 %v848
  %v982 = vpop.f32.mrf.mxu0
  %v983 = vadd.f32 %v874, %v982
  %v984 = vpop.f32.mrf.mxu0
  %v985 = vpop.f32.mrf.mxu0
  %v986 = vadd.f32 %v874, %v985
  %v987 = vpop.f32.mrf.mxu0
  %988 = vmatprep.mubr.bf16.mxu0 0
  %989 = vmatmul.mubr.bf16.gmra.mxu0 %v849
  %v990 = vpop.f32.mrf.mxu0
  %v991 = vadd.f32 %v874, %v990
  %v992 = vpop.f32.mrf.mxu0
  %v993 = vpop.f32.mrf.mxu0
  %v994 = vadd.f32 %v874, %v993
  %v995 = vpop.f32.mrf.mxu0
  %996 = vmatprep.mubr.bf16.mxu0 0
  %997 = vmatmul.mubr.bf16.gmra.mxu0 %v850
  %v998 = vpop.f32.mrf.mxu0
  %v999 = vadd.f32 %v874, %v998
  %v1000 = vpop.f32.mrf.mxu0
  %v1001 = vpop.f32.mrf.mxu0
  %v1002 = vadd.f32 %v874, %v1001
  %v1003 = vpop.f32.mrf.mxu0
  %1004 = vmatprep.mubr.bf16.mxu0 0
  %1005 = vmatmul.mubr.bf16.gmra.mxu0 %v851
  %v1006 = vpop.f32.mrf.mxu0
  %v1007 = vadd.f32 %v874, %v1006
  %v1008 = vpop.f32.mrf.mxu0
  %v1009 = vpop.f32.mrf.mxu0
  %v1010 = vadd.f32 %v874, %v1009
  %v1011 = vpop.f32.mrf.mxu0
  %1012 = vmatprep.mubr.bf16.mxu0 0
  %1013 = vmatmul.mubr.bf16.gmra.mxu0 %v852
  %v1014 = vpop.f32.mrf.mxu0
  %v1015 = vadd.f32 %v874, %v1014
  %v1016 = vpop.f32.mrf.mxu0
  %v1017 = vpop.f32.mrf.mxu0
  %v1018 = vadd.f32 %v874, %v1017
  %v1019 = vpop.f32.mrf.mxu0
  %1020 = vdwg.mxu0
  %1021 = vst [vmem:[%s7] sm:$0xff] %v959
  %1022 = vst [vmem:[%s7 + $0x8] sm:$0xff] %v962
  %1023 = vst [vmem:[%s7 + $0x10] sm:$0xff] %v967
  %1024 = vst [vmem:[%s7 + $0x18] sm:$0xff] %v970
  %1025 = vst [vmem:[%s7 + $0x20] sm:$0xff] %v975
  %1026 = vst [vmem:[%s7 + $0x28] sm:$0xff] %v978
  %1027 = vst [vmem:[%s7 + $0x30] sm:$0xff] %v983
  %1028 = vst [vmem:[%s7 + $0x38] sm:$0xff] %v986
  %1029 = vst [vmem:[%s7 + $0x40] sm:$0xff] %v991
  %1030 = vst [vmem:[%s7 + $0x48] sm:$0xff] %v994
  %1031 = vst [vmem:[%s7 + $0x50] sm:$0xff] %v999
  %1032 = vst [vmem:[%s7 + $0x58] sm:$0xff] %v1002
  %1033 = vst [vmem:[%s7 + $0x60] sm:$0xff] %v1007
  %1034 = vst [vmem:[%s7 + $0x68] sm:$0xff] %v1010
  %1035 = vst [vmem:[%s7 + $0x70] sm:$0xff] %v1015
  %1036 = vst [vmem:[%s7 + $0x78] sm:$0xff] %v1018
  // Predicated region
  $region30: #{model_forward.5} parent=0 // pred_check
    _
  $region31: #{model_forward.5} parent=0 // pred_check_branch
    %1038 = sbr.rel (0) target = $region33
  $region32: #{model_forward.5} parent=0 // pred_region
    _
  $region33: #{model_forward.5} parent=0 // pred_fallthru
    _
  // Predicated region
  $region34: #{model_forward.5} parent=0 // pred_check
    _
  $region35: #{model_forward.5} parent=0 // pred_check_branch
    %1040 = sbr.rel (0) target = $region37
  $region36: #{model_forward.5} parent=0 // pred_region
    _
  $region37: #{model_forward.5} parent=0 // pred_fallthru
    _

</llo_original>
